<compile_context>
chip_gen: v7x
topology: tpu7x:2x2x1
jax: 0.10.0
libtpu: 0.0.40
codegen_flags: <defaults>
</compile_context>

<pallas_src>
import math

import jax
import jax.numpy as jnp
from jax.experimental import pallas as pl
from jax.experimental.pallas import tpu as pltpu


def _gelu(x):
    return jax.nn.gelu(x, approximate=True)


def _round_up(v, m):
    return ((v + m - 1) // m) * m


def _nbytes(shape, dtype):
    return int(math.prod(shape)) * jnp.dtype(dtype).itemsize


def _clamp(v, lo, hi):
    return jnp.minimum(jnp.maximum(v, lo), hi)


# --------------------- generation-aware tiling defaults ---------------------- #

def _tpu_generation_defaults():
    """(vmem_capacity_bytes, default n_groups). Heuristic: 64 MiB/TC => v7x-like
    2-TensorCore chip (use both cores); 128 MiB => single-core v5e/v6e."""
    vmem_cap = 128 * 1024 * 1024
    try:
        info = pltpu.get_tpu_info()
        vmem_cap = int(getattr(info, "vmem_capacity_bytes", vmem_cap))
    except Exception:
        pass
    n_groups = 2 if vmem_cap <= 64 * 1024 * 1024 else 1
    return vmem_cap, n_groups


def _pick_t_hid(d_hid, vmem_cap, override=None):
    if override is not None and d_hid % override == 0:
        return override
    pref = 1024 if vmem_cap > 96 * 1024 * 1024 else 512   # big tiles on 128MiB chips
    for cand in (pref, 512, 384, 256):                    # never fall back to 128
        if cand <= d_hid and d_hid % cand == 0:
            return cand
    return d_hid


def _pick_t_n(n_tokens, vmem_cap, override=None):
    if (override is not None and n_tokens % override == 0
            and (override % 128 == 0 or override == n_tokens)):
        return override
    pref = 2048 if vmem_cap > 96 * 1024 * 1024 else 1024
    if n_tokens <= pref:
        return n_tokens
    for cand in range(pref, 127, -128):
        if n_tokens % cand == 0:
            return cand
    return n_tokens


# ----------------------------- Pallas kernel ------------------------------- #

def _make_moe_kernel(n_hid, n_tok, t_n):
    def kernel(batch_ref, wfc_ref, wproj_ref, cw_ref, out_ref, eo_ref):
        e = pl.program_id(1)          # expert within this group
        s = pl.program_id(2)          # phase: [0, n_hid) MLP tiles, then combine tiles

        @pl.when(jnp.logical_and(e == 0, s == 0))
        def _init_out():
            out_ref[...] = jnp.zeros_like(out_ref)

        @pl.when(s == 0)
        def _init_eo():
            eo_ref[...] = jnp.zeros_like(eo_ref)

        @pl.when(s < n_hid)
        def _mlp():
            # expert MLP, streamed over d_hid tiles (GELU is elementwise -> per-tile ok)
            hblk = _gelu(jnp.dot(batch_ref[...], wfc_ref[...],
                                 preferred_element_type=jnp.float32))
            eo_ref[...] += jnp.dot(hblk.astype(wproj_ref.dtype), wproj_ref[...],
                                   preferred_element_type=jnp.float32)

        @pl.when(s >= n_hid)
        def _combine():
            # combine one token tile: out[t_blk] += cw[e][t_blk, :] @ eo
            t = s - n_hid
            row0 = pl.multiple_of(t * t_n, t_n)
            out_ref[pl.ds(row0, t_n), :] += jnp.dot(
                cw_ref[...], eo_ref[...].astype(cw_ref.dtype),
                preferred_element_type=jnp.float32)

    return kernel


def moe_expert_pallas(exp_batches, c_fc, c_proj, cw_t, *,
                      t_hid=None, t_n=None, n_groups=None, out_dtype=jnp.float32):
    """exp_batches [n_exp, cap, d] bf16, c_fc [n_exp, d, d_hid], c_proj [n_exp, d_hid, d],
    cw_t [n_exp, N, cap] bf16  ->  [N, d]."""
    n_exp, cap, d = exp_batches.shape
    d_hid = c_fc.shape[2]
    n_tokens = cw_t.shape[1]

    vmem_cap, default_groups = _tpu_generation_defaults()
    if n_groups is None:
        n_groups = default_groups
    if n_exp % n_groups != 0:
        n_groups = 1
    epg = n_exp // n_groups

    t_hid = _pick_t_hid(d_hid, vmem_cap, t_hid)
    t_n = _pick_t_n(n_tokens, vmem_cap, t_n)
    n_hid = d_hid // t_hid
    n_tok = n_tokens // t_n

    bf = jnp.bfloat16
    # no-op casts when the caller already supplies bf16 (the intended hot path)
    exp_batches = exp_batches.astype(bf)
    c_fc = c_fc.astype(bf)
    c_proj = c_proj.astype(bf)
    cw_t = cw_t.astype(bf)

    flops = n_exp * (2 * cap * d * d_hid          # fc
                     + 2 * cap * d_hid * d        # proj
                     + 2 * n_tokens * cap * d)    # combine
    bytes_accessed = (_nbytes((n_exp, cap, d), bf)
                      + _nbytes((n_exp, d, d_hid), bf)
                      + _nbytes((n_exp, d_hid, d), bf)
                      + _nbytes((n_exp, n_tokens, cap), bf)
                      + _nbytes((n_groups, n_tokens, d), jnp.float32))

    # planned VMEM (double-buffered inputs + resident f32 output + eo scratch)
    blk_bytes = (2 * _nbytes((cap, d), bf)
                 + 2 * (_nbytes((d, t_hid), bf) + _nbytes((t_hid, d), bf))
                 + 2 * _nbytes((t_n, cap), bf)
                 + 2 * _nbytes((n_tokens, d), jnp.float32)
                 + _nbytes((cap, d), jnp.float32))
    vmem_limit = int(min(vmem_cap - 8 * 1024 * 1024,
                         max(int(blk_bytes * 1.4), 32 * 1024 * 1024)))
    vmem_limit = max(vmem_limit, 16 * 1024 * 1024)

    kernel = _make_moe_kernel(n_hid, n_tok, t_n)

    def batch_map(g, e, s):
        return (g * epg + e, 0, 0)

    def wfc_map(g, e, s):
        return (g * epg + e, 0, _clamp(s, 0, n_hid - 1))

    def wproj_map(g, e, s):
        return (g * epg + e, _clamp(s, 0, n_hid - 1), 0)

    def cw_map(g, e, s):
        return (g * epg + e, _clamp(s - n_hid, 0, n_tok - 1), 0)

    def out_map(g, e, s):
        return (g, 0, 0)

    partial = pl.pallas_call(
        kernel,
        out_shape=jax.ShapeDtypeStruct((n_groups, n_tokens, d), jnp.float32),
        grid_spec=pltpu.PrefetchScalarGridSpec(
            num_scalar_prefetch=0,
            grid=(n_groups, epg, n_hid + n_tok),
            in_specs=[
                pl.BlockSpec((None, cap, d), batch_map),      # gathered expert batch
                pl.BlockSpec((None, d, t_hid), wfc_map),      # fc weight tile
                pl.BlockSpec((None, t_hid, d), wproj_map),    # proj weight tile
                pl.BlockSpec((None, t_n, cap), cw_map),       # combine-weight token tile
            ],
            out_specs=pl.BlockSpec((None, n_tokens, d), out_map),
            scratch_shapes=[
                pltpu.VMEM((cap, d), jnp.float32),            # expert MLP output accum
            ],
        ),
        compiler_params=pltpu.CompilerParams(
            dimension_semantics=("parallel", "arbitrary", "arbitrary"),
            vmem_limit_bytes=vmem_limit,
        ),
        cost_estimate=pl.CostEstimate(
            flops=flops,
            transcendentals=n_exp * cap * d_hid,
            bytes_accessed=bytes_accessed,
        ),
    )(exp_batches, c_fc, c_proj, cw_t)

    out = jnp.sum(partial, axis=0) if n_groups > 1 else partial[0]
    return out.astype(out_dtype)


# --------------------------- Router (JAX glue) ------------------------------ #

def router(x, w_g, w_noise, *, n_exp, top_k, capacity_factor,
           use_noisy_top_k, noise_key):
    """Returns (tok_idx [n_exp, cap] int32, cw_t [n_exp, N, cap] bf16, cap)."""
    B, T, d = x.shape
    N = B * T

    # nanoMoE expert capacity, padded so cap is lane/MXU friendly.
    capacity = math.floor(top_k * capacity_factor * N / n_exp)
    capacity += capacity % 2
    capacity = max(capacity, 2)
    cap_pad = max(_round_up(capacity, 128), 128)
    # TODO(synk): pad cap only to 16 for the sublane uses and 128 for the lane
    # use of cw to shave the dead-row MLP work (small win, kept simple here).

    xf = x.reshape(N, d)
    logits = xf @ w_g.T                                          # [N, n_exp]
    if use_noisy_top_k:
        noise = jax.nn.softplus(xf @ w_noise.T)
        noise = noise * jax.random.normal(noise_key, noise.shape, dtype=noise.dtype)
        logits = logits + noise

    topk_logits, topk_idx = jax.lax.top_k(logits, top_k)         # [N, k]
    masked = jnp.full_like(logits, -jnp.inf)
    masked = masked.at[jnp.arange(N)[:, None], topk_idx].set(topk_logits)
    router_probs = jax.nn.softmax(masked, axis=-1)               # [N, n_exp]

    # Slot assignment using nanoMoE's k-major cumsum order; no [k,N,cap] one-hot
    # and no dense dispatch mask -- just small index/weight scatters.
    flat_e = topk_idx.T.reshape(-1)                              # [k*N] expert ids
    onehot_e = jax.nn.one_hot(flat_e, n_exp, dtype=jnp.int32)    # [k*N, n_exp] (small)
    rank = jnp.take_along_axis(jnp.cumsum(onehot_e, axis=0) - 1,
                               flat_e[:, None], axis=1)[:, 0]    # [k*N]
    keep = rank < capacity
    tok = jnp.tile(jnp.arange(N, dtype=jnp.int32), top_k)        # [k*N] token ids
    wgt = jnp.take_along_axis(router_probs, topk_idx, axis=1).T.reshape(-1)

    slot = jnp.where(keep, rank, cap_pad).astype(jnp.int32)      # OOB slot => dropped
    tok_idx = jnp.zeros((n_exp, cap_pad), jnp.int32).at[
        flat_e, slot].set(tok, mode="drop")
    cw_t = jnp.zeros((n_exp, N, cap_pad), jnp.bfloat16).at[
        flat_e, tok, slot].set(wgt.astype(jnp.bfloat16), mode="drop")
    return tok_idx, cw_t, cap_pad


# ----------------------------- MOELayer forward ----------------------------- #

def moe_layer_forward(x, params, *, n_exp, top_k, capacity_factor,
                      use_noisy_top_k, noise_key,
                      t_hid=None, t_n=None, n_groups=None):
    B, T, d = x.shape
    N = B * T
    tok_idx, cw_t, _cap = router(
        x, params["w_g"], params["w_noise"],
        n_exp=n_exp, top_k=top_k, capacity_factor=capacity_factor,
        use_noisy_top_k=use_noisy_top_k, noise_key=noise_key)

    # dispatch: index gather of bf16 token rows (empty slots read row 0; their
    # combine weight column is zero so they never reach the output)
    x_bf = x.reshape(N, d).astype(jnp.bfloat16)
    n_exp_, cap = tok_idx.shape
    exp_batches = jnp.take(x_bf, tok_idx.reshape(-1), axis=0).reshape(n_exp_, cap, d)

    out = moe_expert_pallas(
        exp_batches, params["c_fc"], params["c_proj"], cw_t,
        t_hid=t_hid, t_n=t_n, n_groups=n_groups, out_dtype=x.dtype)
    return out.reshape(B, T, d)


# ------------------- pure-JAX reference (nanoMoE forward) ------------------- #

def _reference_forward(x, params, *, n_exp, top_k, capacity_factor,
                       use_noisy_top_k, noise_key):
    """Dense one-hot implementation of the same forward (test-time only), with the
    same bf16 operand / f32 accumulation precision as the kernel."""
    B, T, d = x.shape
    N = B * T
    capacity = math.floor(top_k * capacity_factor * N / n_exp)
    capacity += capacity % 2
    capacity = max(capacity, 2)
    cap_pad = max(_round_up(capacity, 128), 128)

    xf = x.reshape(N, d)
    logits = xf @ params["w_g"].T
    if use_noisy_top_k:
        noise = jax.nn.softplus(xf @ params["w_noise"].T)
        noise = noise * jax.random.normal(noise_key, noise.shape, dtype=noise.dtype)
        logits = logits + noise
    topk_logits, topk_idx = jax.lax.top_k(logits, top_k)
    masked = jnp.full_like(logits, -jnp.inf)
    masked = masked.at[jnp.arange(N)[:, None], topk_idx].set(topk_logits)
    probs = jax.nn.softmax(masked, axis=-1)

    exp_mask = jax.nn.one_hot(topk_idx, n_exp, dtype=jnp.int32)      # [N,k,e]
    exp_mask = jnp.transpose(exp_mask, (1, 0, 2))                     # [k,N,e]
    exp_rank = jnp.cumsum(exp_mask.reshape(top_k * N, n_exp), 0) - 1
    exp_rank = exp_rank.reshape(top_k, N, n_exp)
    exp_mask = exp_mask * (exp_rank < capacity).astype(exp_mask.dtype)
    exp_rank = jnp.sum(exp_mask * exp_rank, axis=-1)                  # [k,N]
    maskf = exp_mask.astype(jnp.float32)
    exp_weights = maskf * probs[None]                                 # [k,N,e]
    rank_sc = jax.nn.one_hot(exp_rank, cap_pad, dtype=jnp.float32)    # [k,N,cap]
    cw = jnp.einsum("kne,knc->enc", exp_weights, rank_sc)             # [e,N,cap]
    mask_ecn = jnp.einsum("kne,knc->ecn", maskf, rank_sc)             # [e,cap,N]

    bf = jnp.bfloat16
    batch = jnp.einsum("ecn,nd->ecd", mask_ecn.astype(bf), xf.astype(bf),
                       preferred_element_type=jnp.float32).astype(bf)
    hh = _gelu(jnp.einsum("ecd,edh->ech", batch, params["c_fc"].astype(bf),
                          preferred_element_type=jnp.float32))
    eo = jnp.einsum("ech,ehd->ecd", hh.astype(bf), params["c_proj"].astype(bf),
                    preferred_element_type=jnp.float32)
    out = jnp.einsum("enc,ecd->nd", cw.astype(bf), eo.astype(bf),
                     preferred_element_type=jnp.float32)
    return out.reshape(B, T, d)


if __name__ == "__main__":
    B, T, d = 2, 128, 128
    n_exp, top_k = 8, 2
    capacity_factor = 1.25
    use_noisy_top_k = True

    key = jax.random.PRNGKey(0)
    kx, kg, kn, kfc, kpr, knoise = jax.random.split(key, 6)

    x = jax.random.normal(kx, (B, T, d), dtype=jnp.float32)
    params = {
        "w_g": 0.02 * jax.random.normal(kg, (n_exp, d), dtype=jnp.float32),
        "w_noise": 0.02 * jax.random.normal(kn, (n_exp, d), dtype=jnp.float32),
        # expert weights kept in bf16 upstream (no boundary casts on the hot path)
        "c_fc": (0.02 * jax.random.normal(kfc, (n_exp, d, 4 * d),
                                          dtype=jnp.float32)).astype(jnp.bfloat16),
        "c_proj": (0.02 * jax.random.normal(kpr, (n_exp, 4 * d, d),
                                            dtype=jnp.float32)).astype(jnp.bfloat16),
    }

    # small tiles chosen explicitly so the run exercises multiple d_hid tiles and
    # multiple combine token tiles; at realistic sizes leave them None and the
    # generation-aware defaults pick t_hid / t_N / n_groups / vmem_limit.
    out = moe_layer_forward(
        x, params, n_exp=n_exp, top_k=top_k, capacity_factor=capacity_factor,
        use_noisy_top_k=use_noisy_top_k, noise_key=knoise,
        t_hid=256, t_n=128)
    out = jax.block_until_ready(out)
    assert out.shape == (B, T, d)

    ref = _reference_forward(
        x, params, n_exp=n_exp, top_k=top_k, capacity_factor=capacity_factor,
        use_noisy_top_k=use_noisy_top_k, noise_key=knoise)
    out32 = out.astype(jnp.float32)
    ref32 = ref.astype(jnp.float32)
    max_err = float(jnp.max(jnp.abs(out32 - ref32)))
    assert jnp.allclose(out32, ref32, rtol=1e-2, atol=3e-3), \
        f"Pallas output mismatch (max abs err {max_err})"

    print("KERNEL_OK")
</pallas_src>

<mosaic_0001>
module attributes {stable_mosaic.version = 11 : i64} {
  func.func @kernel(%arg0: i32, %arg1: i32, %arg2: i32, %arg3: memref<1x128x128xbf16, #tpu.memory_space<vmem>>, %arg4: memref<1x128x256xbf16, #tpu.memory_space<vmem>>, %arg5: memref<1x256x128xbf16, #tpu.memory_space<vmem>>, %arg6: memref<1x128x128xbf16, #tpu.memory_space<vmem>>, %arg7: memref<1x256x128xf32, #tpu.memory_space<vmem>>, %arg8: memref<128x128xf32, #tpu.memory_space<vmem>>) attributes {dimension_semantics = [#tpu.dimension_semantics<parallel>, #tpu.dimension_semantics<arbitrary>, #tpu.dimension_semantics<arbitrary>], iteration_bounds = array<i64: 1, 8, 4>, scalar_prefetch = 0 : i64, scratch_operands = 1 : i64, tpu.core_type = #tpu.core_type<tc>, window_params = [{transform_indices = @transform_0, window_bounds = array<i64: 1, 128, 128>}, {transform_indices = @transform_1, window_bounds = array<i64: 1, 128, 256>}, {transform_indices = @transform_2, window_bounds = array<i64: 1, 256, 128>}, {transform_indices = @transform_3, window_bounds = array<i64: 1, 128, 128>}, {transform_indices = @transform_4, window_bounds = array<i64: 1, 256, 128>}]} {
    %c0_i32 = arith.constant 0 : i32
    %0 = arith.cmpi eq, %arg1, %c0_i32 : i32
    %c0_i32_0 = arith.constant 0 : i32
    %1 = arith.cmpi eq, %arg2, %c0_i32_0 : i32
    %2 = arith.andi %0, %1 : i1
    %3 = arith.extui %2 : i1 to i32
    %c0_i32_1 = arith.constant 0 : i32
    %4 = arith.cmpi ne, %3, %c0_i32_1 : i32
    scf.if %4 {
      %cst = arith.constant 0.000000e+00 : f32
      %14 = vector.broadcast %cst : f32 to vector<256x128xf32>
      %c0 = arith.constant 0 : index
      %c0_7 = arith.constant 0 : index
      %c0_8 = arith.constant 0 : index
      %15 = vector.load %arg7[%c0, %c0_7, %c0_8] : memref<1x256x128xf32, #tpu.memory_space<vmem>>, vector<1x256x128xf32>
      %16 = vector.shape_cast %15 : vector<1x256x128xf32> to vector<256x128xf32>
      %17 = vector.shape_cast %14 : vector<256x128xf32> to vector<1x256x128xf32>
      tpu.vector_store %arg7[%c0, %c0_7, %c0_8], %17 {strides = array<i32>} : memref<1x256x128xf32, #tpu.memory_space<vmem>>, vector<1x256x128xf32>,
    } else {
    }
    %c0_i32_2 = arith.constant 0 : i32
    %5 = arith.cmpi eq, %arg2, %c0_i32_2 : i32
    %6 = arith.extui %5 : i1 to i32
    %c0_i32_3 = arith.constant 0 : i32
    %7 = arith.cmpi ne, %6, %c0_i32_3 : i32
    scf.if %7 {
      %cst = arith.constant 0.000000e+00 : f32
      %14 = vector.broadcast %cst : f32 to vector<128x128xf32>
      %c0 = arith.constant 0 : index
      %c0_7 = arith.constant 0 : index
      %15 = vector.load %arg8[%c0, %c0_7] : memref<128x128xf32, #tpu.memory_space<vmem>>, vector<128x128xf32>
      tpu.vector_store %arg8[%c0, %c0_7], %14 {strides = array<i32>} : memref<128x128xf32, #tpu.memory_space<vmem>>, vector<128x128xf32>,
    } else {
    }
    %c2_i32 = arith.constant 2 : i32
    %8 = arith.cmpi slt, %arg2, %c2_i32 : i32
    %9 = arith.extui %8 : i1 to i32
    %c0_i32_4 = arith.constant 0 : i32
    %10 = arith.cmpi ne, %9, %c0_i32_4 : i32
    scf.if %10 {
      %c0 = arith.constant 0 : index
      %c0_7 = arith.constant 0 : index
      %c0_8 = arith.constant 0 : index
      %14 = vector.load %arg3[%c0, %c0_7, %c0_8] : memref<1x128x128xbf16, #tpu.memory_space<vmem>>, vector<1x128x128xbf16>
      %15 = vector.shape_cast %14 : vector<1x128x128xbf16> to vector<128x128xbf16>
      %c0_9 = arith.constant 0 : index
      %c0_10 = arith.constant 0 : index
      %c0_11 = arith.constant 0 : index
      %16 = vector.load %arg4[%c0_9, %c0_10, %c0_11] : memref<1x128x256xbf16, #tpu.memory_space<vmem>>, vector<1x128x256xbf16>
      %17 = vector.shape_cast %16 : vector<1x128x256xbf16> to vector<128x256xbf16>
      %cst = arith.constant dense<0.000000e+00> : vector<128x256xf32>
      %18 = tpu.matmul %15, %17, %cst {dimension_numbers = #tpu.dot_dimension_numbers<[1], [0], [0], [1], [0, 0, 1, 1], [], []>} : vector<128x128xbf16>, vector<128x256xbf16>, vector<128x256xf32> -> vector<128x256xf32>
      %19 = arith.mulf %18, %18 : vector<128x256xf32>
      %20 = arith.mulf %18, %19 : vector<128x256xf32>
      %cst_12 = arith.constant 4.471500e-02 : f32
      %21 = vector.broadcast %cst_12 : f32 to vector<128x256xf32>
      %22 = arith.mulf %21, %20 : vector<128x256xf32>
      %23 = arith.addf %18, %22 : vector<128x256xf32>
      %cst_13 = arith.constant 0.797884583 : f32
      %24 = vector.broadcast %cst_13 : f32 to vector<128x256xf32>
      %25 = arith.mulf %24, %23 : vector<128x256xf32>
      %26 = math.tanh %25 : vector<128x256xf32>
      %cst_14 = arith.constant 1.000000e+00 : f32
      %27 = vector.broadcast %cst_14 : f32 to vector<128x256xf32>
      %28 = arith.addf %27, %26 : vector<128x256xf32>
      %cst_15 = arith.constant 5.000000e-01 : f32
      %29 = vector.broadcast %cst_15 : f32 to vector<128x256xf32>
      %30 = arith.mulf %29, %28 : vector<128x256xf32>
      %31 = arith.mulf %18, %30 : vector<128x256xf32>
      %c0_16 = arith.constant 0 : index
      %c0_17 = arith.constant 0 : index
      %32 = vector.load %arg8[%c0_16, %c0_17] : memref<128x128xf32, #tpu.memory_space<vmem>>, vector<128x128xf32>
      %33 = arith.truncf %31 : vector<128x256xf32> to vector<128x256xbf16>
      %c0_18 = arith.constant 0 : index
      %c0_19 = arith.constant 0 : index
      %c0_20 = arith.constant 0 : index
      %34 = vector.load %arg5[%c0_18, %c0_19, %c0_20] : memref<1x256x128xbf16, #tpu.memory_space<vmem>>, vector<1x256x128xbf16>
      %35 = vector.shape_cast %34 : vector<1x256x128xbf16> to vector<256x128xbf16>
      %cst_21 = arith.constant dense<0.000000e+00> : vector<128x128xf32>
      %36 = tpu.matmul %33, %35, %cst_21 {dimension_numbers = #tpu.dot_dimension_numbers<[1], [0], [0], [1], [0, 0, 1, 1], [], []>} : vector<128x256xbf16>, vector<256x128xbf16>, vector<128x128xf32> -> vector<128x128xf32>
      %37 = arith.addf %32, %36 : vector<128x128xf32>
      %c0_22 = arith.constant 0 : index
      %c0_23 = arith.constant 0 : index
      %38 = vector.load %arg8[%c0_22, %c0_23] : memref<128x128xf32, #tpu.memory_space<vmem>>, vector<128x128xf32>
      tpu.vector_store %arg8[%c0_22, %c0_23], %37 {strides = array<i32>} : memref<128x128xf32, #tpu.memory_space<vmem>>, vector<128x128xf32>,
    } else {
    }
    %c2_i32_5 = arith.constant 2 : i32
    %11 = arith.cmpi sge, %arg2, %c2_i32_5 : i32
    %12 = arith.extui %11 : i1 to i32
    %c0_i32_6 = arith.constant 0 : i32
    %13 = arith.cmpi ne, %12, %c0_i32_6 : i32
    scf.if %13 {
      %c2_i32_7 = arith.constant 2 : i32
      %14 = arith.subi %arg2, %c2_i32_7 : i32
      %c128_i32 = arith.constant 128 : i32
      %15 = arith.muli %14, %c128_i32 : i32
      %16 = tpu.assume_multiple %15, 128 : i32
      %c0 = arith.constant 0 : index
      %17 = arith.index_cast %16 : i32 to index
      %c0_8 = arith.constant 0 : index
      %18 = vector.load %arg7[%c0, %17, %c0_8] : memref<1x256x128xf32, #tpu.memory_space<vmem>>, vector<1x128x128xf32>
      %19 = vector.shape_cast %18 : vector<1x128x128xf32> to vector<128x128xf32>
      %c0_9 = arith.constant 0 : index
      %c0_10 = arith.constant 0 : index
      %c0_11 = arith.constant 0 : index
      %20 = vector.load %arg6[%c0_9, %c0_10, %c0_11] : memref<1x128x128xbf16, #tpu.memory_space<vmem>>, vector<1x128x128xbf16>
      %21 = vector.shape_cast %20 : vector<1x128x128xbf16> to vector<128x128xbf16>
      %c0_12 = arith.constant 0 : index
      %c0_13 = arith.constant 0 : index
      %22 = vector.load %arg8[%c0_12, %c0_13] : memref<128x128xf32, #tpu.memory_space<vmem>>, vector<128x128xf32>
      %23 = arith.truncf %22 : vector<128x128xf32> to vector<128x128xbf16>
      %cst = arith.constant dense<0.000000e+00> : vector<128x128xf32>
      %24 = tpu.matmul %21, %23, %cst {dimension_numbers = #tpu.dot_dimension_numbers<[1], [0], [0], [1], [0, 0, 1, 1], [], []>} : vector<128x128xbf16>, vector<128x128xbf16>, vector<128x128xf32> -> vector<128x128xf32>
      %25 = arith.addf %19, %24 : vector<128x128xf32>
      %c0_14 = arith.constant 0 : index
      %26 = arith.index_cast %16 : i32 to index
      %c0_15 = arith.constant 0 : index
      %27 = vector.load %arg7[%c0_14, %26, %c0_15] : memref<1x256x128xf32, #tpu.memory_space<vmem>>, vector<1x128x128xf32>
      %28 = vector.shape_cast %27 : vector<1x128x128xf32> to vector<128x128xf32>
      %29 = vector.shape_cast %25 : vector<128x128xf32> to vector<1x128x128xf32>
      tpu.vector_store %arg7[%c0_14, %26, %c0_15], %29 {strides = array<i32>} : memref<1x256x128xf32, #tpu.memory_space<vmem>>, vector<1x128x128xf32>,
    } else {
    }
    return
  }
  func.func @transform_0(%arg0: i32, %arg1: i32, %arg2: i32) -> (i32, i32, i32) {
    %c8_i32 = arith.constant 8 : i32
    %0 = arith.muli %arg0, %c8_i32 : i32
    %1 = arith.addi %0, %arg1 : i32
    %c0_i32 = arith.constant 0 : i32
    %c0_i32_0 = arith.constant 0 : i32
    %c0_i32_1 = arith.constant 0 : i32
    return %1, %c0_i32, %c0_i32_0 : i32, i32, i32
  }
  func.func @transform_1(%arg0: i32, %arg1: i32, %arg2: i32) -> (i32, i32, i32) {
    %c8_i32 = arith.constant 8 : i32
    %0 = arith.muli %arg0, %c8_i32 : i32
    %1 = arith.addi %0, %arg1 : i32
    %c0_i32 = arith.constant 0 : i32
    %2 = arith.maxsi %arg2, %c0_i32 : i32
    %c1_i32 = arith.constant 1 : i32
    %3 = arith.minsi %2, %c1_i32 : i32
    %c0_i32_0 = arith.constant 0 : i32
    %c0_i32_1 = arith.constant 0 : i32
    return %1, %c0_i32_0, %3 : i32, i32, i32
  }
  func.func @transform_2(%arg0: i32, %arg1: i32, %arg2: i32) -> (i32, i32, i32) {
    %c8_i32 = arith.constant 8 : i32
    %0 = arith.muli %arg0, %c8_i32 : i32
    %1 = arith.addi %0, %arg1 : i32
    %c0_i32 = arith.constant 0 : i32
    %2 = arith.maxsi %arg2, %c0_i32 : i32
    %c1_i32 = arith.constant 1 : i32
    %3 = arith.minsi %2, %c1_i32 : i32
    %c0_i32_0 = arith.constant 0 : i32
    %c0_i32_1 = arith.constant 0 : i32
    return %1, %3, %c0_i32_0 : i32, i32, i32
  }
  func.func @transform_3(%arg0: i32, %arg1: i32, %arg2: i32) -> (i32, i32, i32) {
    %c8_i32 = arith.constant 8 : i32
    %0 = arith.muli %arg0, %c8_i32 : i32
    %1 = arith.addi %0, %arg1 : i32
    %c2_i32 = arith.constant 2 : i32
    %2 = arith.subi %arg2, %c2_i32 : i32
    %c0_i32 = arith.constant 0 : i32
    %3 = arith.maxsi %2, %c0_i32 : i32
    %c1_i32 = arith.constant 1 : i32
    %4 = arith.minsi %3, %c1_i32 : i32
    %c0_i32_0 = arith.constant 0 : i32
    %c0_i32_1 = arith.constant 0 : i32
    return %1, %4, %c0_i32_0 : i32, i32, i32
  }
  func.func @transform_4(%arg0: i32, %arg1: i32, %arg2: i32) -> (i32, i32, i32) {
    %c0_i32 = arith.constant 0 : i32
    %c0_i32_0 = arith.constant 0 : i32
    %c0_i32_1 = arith.constant 0 : i32
    return %arg0, %c0_i32, %c0_i32_0 : i32, i32, i32
  }
}

</mosaic_0001>

<llo_original>
// kernel: tpu_custom_call.1
$region0: #{tpu_custom_call.1}
  #allocation0 [shape = 'u32[]', space=smem, size = 0x4, offset = 0x4, fixed_abs, tag = 'smem constant byte address 0x4 - core index']
  #allocation1 [shape = 'u32[144,128]{1,0:T(1,128)}', space=vmem, size = 0x12000, scoped, tag = 'internal scratch']
  #allocation2 [shape = 'f32[128,128]{1,0:T(8,128)}', space=vmem, size = 0x10000, scoped, tag = 'scratch operand']
  %s0 = inlined_call_operand.hbm [shape: bf16[8,128,128], index: 0, kind: input, shape index: {}]
  %s1 = inlined_call_operand.hbm [shape: bf16[8,128,512], index: 1, kind: input, shape index: {}]
  %s2 = inlined_call_operand.hbm [shape: bf16[8,512,128], index: 2, kind: input, shape index: {}]
  %s3 = inlined_call_operand.hbm [shape: bf16[8,256,128], index: 3, kind: input, shape index: {}]
  %s4 = inlined_call_operand.hbm [shape: f32[1,256,128], index: 4, kind: output, shape index: {}]
  %s5 = sld [smem:[#allocation0]]
  $region81: #{tpu_custom_call.1} parent=0
    _
  %s7 = ssub.s32 1, %s5
  %s8 = scalar_select 0, %s7, %s5
  $region1: #{tpu_custom_call.1} parent=0
    #allocation3 [shape = 'u8[65536]{0}', space=vmem, size = 0x10000, scoped, tag = 'input window, operand 0']
    #allocation4 [shape = 's32[2]{0}', space=sflag, size = 0x8, scoped, tag = 'scoped memory for tpu_custom_call.1']
    #allocation5 [shape = 's32[2]{0}', space=sflag, size = 0x8, scoped, tag = 'scoped memory for tpu_custom_call.1']
    #allocation6 [shape = 'u8[131072]{0}', space=vmem, size = 0x20000, scoped, tag = 'input window, operand 1']
    #allocation7 [shape = 's32[2]{0}', space=sflag, size = 0x8, scoped, tag = 'scoped memory for tpu_custom_call.1']
    #allocation8 [shape = 'u8[131072]{0}', space=vmem, size = 0x20000, scoped, tag = 'input window, operand 2']
    #allocation9 [shape = 'u8[65536]{0}', space=vmem, size = 0x10000, scoped, tag = 'input window, operand 3']
    #allocation10 [shape = 's32[2]{0}', space=sflag, size = 0x8, scoped, tag = 'scoped memory for tpu_custom_call.1']
    #allocation11 [shape = 'u8[131072]{0}', space=vmem, size = 0x20000, scoped, tag = 'output window, operand 0, single buffered']
    %9 = vsyncpa [#allocation4], 0
    %s10 = scalar_lea.sflag [#allocation4], 1
    %11 = vsyncpa %s10, 0
    %12 = vsyncpa [#allocation7], 0
    %s13 = scalar_lea.sflag [#allocation7], 1
    %14 = vsyncpa %s13, 0
    %15 = vsyncpa [#allocation10], 0
    %s16 = scalar_lea.sflag [#allocation10], 1
    %17 = vsyncpa %s16, 0
    %18 = vsyncpa [#allocation5], 0
    loop: start=0, step=1, limit=34
    $region2: #{tpu_custom_call.1} parent=1 // loop_pre_header
      _
    $region3: #{tpu_custom_call.1} parent=1 // loop_header
      %s20 = sphi 0, %s24
      %p21 = scmp.ge.s32.totalorder %s20, 34
      %s27 = sphi 0, %s46
      %s28 = sphi 0, %s42
      %s29 = sphi 0, %s38
      %s30 = sphi 0, %s27
      %s31 = sphi 0, %s28
      %s32 = sphi 0, %s29
      %s33 = sphi 0, %s30
      %s34 = sphi 0, %s31
      %s35 = sphi 0, %s32
      %s53 = sphi 0, %s55
      %s56 = sphi 0, %s53
      %s57 = sphi 0, %s56
      %s73 = sphi 0, %s57
      %s93 = sphi 0, %s95
      %s96 = sphi 0, %s93
      %s97 = sphi 0, %s96
      %s113 = sphi 0, %s97
      %s133 = sphi 0, %s135
      %s136 = sphi 0, %s133
      %s137 = sphi 0, %s136
      %s153 = sphi 0, %s137
      %s175 = sphi 0, %s177
      %s178 = sphi 0, %s175
      %s179 = sphi 0, %s178
      %s195 = sphi 0, %s179
      %s201 = sphi 0, %s203
      %s204 = sphi 0, %s201
      %s205 = sphi 0, %s204
      %s221 = sphi 0, %s205
    $region4: #{tpu_custom_call.1} parent=1 // loop_header_branch
      %23 = sbr.rel (%p21) target = $region8
    $region5: #{tpu_custom_call.1} parent=1 // loop_body
      %s25 = ssub.s32 %s20, 1
      %s26 = ssub.s32 %s20, 2
      %s36 = sadd.s32 1, %s29
      %p37 = scmp.ge.s32.totalorder %s36, 4
      %s38 = scalar_select %p37, 0, %s36
      %s39 = sadd.s32 1, %s28
      %s40 = scalar_select %p37, %s39, %s28
      %p41 = scmp.ge.s32.totalorder %s40, 8
      %s42 = scalar_select %p41, 0, %s40
      %s43 = sadd.s32 1, %s27
      %s44 = scalar_select %p41, %s43, %s27
      %p45 = scmp.ge.s32.totalorder %s44, 1
      %s46 = scalar_select %p45, 0, %s44
      %s47 = smul.u32 %s27, 8
      %s48 = sadd.s32 %s47, %s28
      %s49 = smul.u32 %s46, 8
      %s50 = sadd.s32 %s49, %s42
      %s51 = ssub.s32 %s48, %s50
      %p52 = scmp.eq.s32.totalorder %s51, 0
      %s54 = sadd.s32 %s53, 1
      %s55 = scalar_select %p52, %s53, %s54
      %p58 = pneg %p52
      %p59 = scmp.eq.s32.totalorder %s20, 31
      %p60 = por %p58, %p59
      %p61 = scmp.ne.s32.totalorder %s53, %s56
      %p62 = scmp.eq.s32.totalorder %s20, 0
      %p63 = por %p61, %p62
      %p64 = scmp.ne.s32.totalorder %s53, %s56
      %p65 = scmp.eq.s32.totalorder %s25, 31
      %p66 = por %p64, %p65
      %p67 = scmp.ne.s32.totalorder %s56, %s57
      %p68 = scmp.eq.s32.totalorder %s25, 0
      %p69 = por %p67, %p68
      %p70 = scmp.ne.s32.totalorder %s56, %s57
      %p71 = scmp.eq.s32.totalorder %s26, 31
      %p72 = por %p70, %p71
      %p74 = scmp.ne.s32.totalorder %s57, %s73
      %p75 = scmp.eq.s32.totalorder %s26, 0
      %p76 = por %p74, %p75
      %s77 = smul.u32 %s27, 8
      %s78 = sadd.s32 %s77, %s28
      %p79 = scmp.gt.s32.totalorder %s29, 0
      %s80 = scalar_select %p79, %s29, 0
      %p81 = scmp.lt.s32.totalorder %s80, 1
      %s82 = scalar_select %p81, %s80, 1
      %s83 = smul.u32 %s46, 8
      %s84 = sadd.s32 %s83, %s42
      %p85 = scmp.gt.s32.totalorder %s38, 0
      %s86 = scalar_select %p85, %s38, 0
      %p87 = scmp.lt.s32.totalorder %s86, 1
      %s88 = scalar_select %p87, %s86, 1
      %s89 = ssub.s32 %s78, %s84
      %s90 = ssub.s32 %s82, %s88
      %s91 = sor.u32 %s89, %s90
      %p92 = scmp.eq.s32.totalorder %s91, 0
      %s94 = sadd.s32 %s93, 1
      %s95 = scalar_select %p92, %s93, %s94
      %p98 = pneg %p92
      %p99 = scmp.eq.s32.totalorder %s20, 31
      %p100 = por %p98, %p99
      %p101 = scmp.ne.s32.totalorder %s93, %s96
      %p102 = scmp.eq.s32.totalorder %s20, 0
      %p103 = por %p101, %p102
      %p104 = scmp.ne.s32.totalorder %s93, %s96
      %p105 = scmp.eq.s32.totalorder %s25, 31
      %p106 = por %p104, %p105
      %p107 = scmp.ne.s32.totalorder %s96, %s97
      %p108 = scmp.eq.s32.totalorder %s25, 0
      %p109 = por %p107, %p108
      %p110 = scmp.ne.s32.totalorder %s96, %s97
      %p111 = scmp.eq.s32.totalorder %s26, 31
      %p112 = por %p110, %p111
      %p114 = scmp.ne.s32.totalorder %s97, %s113
      %p115 = scmp.eq.s32.totalorder %s26, 0
      %p116 = por %p114, %p115
      %s117 = smul.u32 %s27, 8
      %s118 = sadd.s32 %s117, %s28
      %p119 = scmp.gt.s32.totalorder %s29, 0
      %s120 = scalar_select %p119, %s29, 0
      %p121 = scmp.lt.s32.totalorder %s120, 1
      %s122 = scalar_select %p121, %s120, 1
      %s123 = smul.u32 %s46, 8
      %s124 = sadd.s32 %s123, %s42
      %p125 = scmp.gt.s32.totalorder %s38, 0
      %s126 = scalar_select %p125, %s38, 0
      %p127 = scmp.lt.s32.totalorder %s126, 1
      %s128 = scalar_select %p127, %s126, 1
      %s129 = ssub.s32 %s118, %s124
      %s130 = ssub.s32 %s122, %s128
      %s131 = sor.u32 %s129, %s130
      %p132 = scmp.eq.s32.totalorder %s131, 0
      %s134 = sadd.s32 %s133, 1
      %s135 = scalar_select %p132, %s133, %s134
      %p138 = pneg %p132
      %p139 = scmp.eq.s32.totalorder %s20, 31
      %p140 = por %p138, %p139
      %p141 = scmp.ne.s32.totalorder %s133, %s136
      %p142 = scmp.eq.s32.totalorder %s20, 0
      %p143 = por %p141, %p142
      %p144 = scmp.ne.s32.totalorder %s133, %s136
      %p145 = scmp.eq.s32.totalorder %s25, 31
      %p146 = por %p144, %p145
      %p147 = scmp.ne.s32.totalorder %s136, %s137
      %p148 = scmp.eq.s32.totalorder %s25, 0
      %p149 = por %p147, %p148
      %p150 = scmp.ne.s32.totalorder %s136, %s137
      %p151 = scmp.eq.s32.totalorder %s26, 31
      %p152 = por %p150, %p151
      %p154 = scmp.ne.s32.totalorder %s137, %s153
      %p155 = scmp.eq.s32.totalorder %s26, 0
      %p156 = por %p154, %p155
      %s157 = smul.u32 %s27, 8
      %s158 = sadd.s32 %s157, %s28
      %s159 = ssub.s32 %s29, 2
      %p160 = scmp.gt.s32.totalorder %s159, 0
      %s161 = scalar_select %p160, %s159, 0
      %p162 = scmp.lt.s32.totalorder %s161, 1
      %s163 = scalar_select %p162, %s161, 1
      %s164 = smul.u32 %s46, 8
      %s165 = sadd.s32 %s164, %s42
      %s166 = ssub.s32 %s38, 2
      %p167 = scmp.gt.s32.totalorder %s166, 0
      %s168 = scalar_select %p167, %s166, 0
      %p169 = scmp.lt.s32.totalorder %s168, 1
      %s170 = scalar_select %p169, %s168, 1
      %s171 = ssub.s32 %s158, %s165
      %s172 = ssub.s32 %s163, %s170
      %s173 = sor.u32 %s171, %s172
      %p174 = scmp.eq.s32.totalorder %s173, 0
      %s176 = sadd.s32 %s175, 1
      %s177 = scalar_select %p174, %s175, %s176
      %p180 = pneg %p174
      %p181 = scmp.eq.s32.totalorder %s20, 31
      %p182 = por %p180, %p181
      %p183 = scmp.ne.s32.totalorder %s175, %s178
      %p184 = scmp.eq.s32.totalorder %s20, 0
      %p185 = por %p183, %p184
      %p186 = scmp.ne.s32.totalorder %s175, %s178
      %p187 = scmp.eq.s32.totalorder %s25, 31
      %p188 = por %p186, %p187
      %p189 = scmp.ne.s32.totalorder %s178, %s179
      %p190 = scmp.eq.s32.totalorder %s25, 0
      %p191 = por %p189, %p190
      %p192 = scmp.ne.s32.totalorder %s178, %s179
      %p193 = scmp.eq.s32.totalorder %s26, 31
      %p194 = por %p192, %p193
      %p196 = scmp.ne.s32.totalorder %s179, %s195
      %p197 = scmp.eq.s32.totalorder %s26, 0
      %p198 = por %p196, %p197
      %s199 = ssub.s32 %s27, %s46
      %p200 = scmp.eq.s32.totalorder %s199, 0
      %s202 = sadd.s32 %s201, 1
      %s203 = scalar_select %p200, %s201, %s202
      %p206 = pneg %p200
      %p207 = scmp.eq.s32.totalorder %s20, 31
      %p208 = por %p206, %p207
      %p209 = scmp.ne.s32.totalorder %s201, %s204
      %p210 = scmp.eq.s32.totalorder %s20, 0
      %p211 = por %p209, %p210
      %p212 = scmp.ne.s32.totalorder %s201, %s204
      %p213 = scmp.eq.s32.totalorder %s25, 31
      %p214 = por %p212, %p213
      %p215 = scmp.ne.s32.totalorder %s204, %s205
      %p216 = scmp.eq.s32.totalorder %s25, 0
      %p217 = por %p215, %p216
      %p218 = scmp.ne.s32.totalorder %s204, %s205
      %p219 = scmp.eq.s32.totalorder %s26, 31
      %p220 = por %p218, %p219
      %p222 = scmp.ne.s32.totalorder %s205, %s221
      %p223 = scmp.eq.s32.totalorder %s26, 0
      %p224 = por %p222, %p223
      %p225 = scmp.le.s32.totalorder 1, %s20
      %p226 = scmp.lt.s32.totalorder %s20, 33
      %p227 = pnand %p225, %p226
      %p228 = pneg %p227
      // Predicated region
      $region9: #{tpu_custom_call.1} parent=5 // pred_check
        _
      $region10: #{tpu_custom_call.1} parent=5 // pred_check_branch
        %230 = sbr.rel (%p227) target = $region12
      $region11: #{tpu_custom_call.1} parent=5 // pred_region
        %s231 = ssub.s32 %s20, 1
      $region12: #{tpu_custom_call.1} parent=5 // pred_fallthru
        _
      %p232 = scmp.lt.s32.totalorder %s20, 32
      // Predicated region
      $region13: #{tpu_custom_call.1} parent=5 // pred_check
        %p233 = pneg %p232
      $region14: #{tpu_custom_call.1} parent=5 // pred_check_branch
        %235 = sbr.rel (%p233) target = $region16
      $region15: #{tpu_custom_call.1} parent=5 // pred_region
        // Predicated region
        $region17: #{tpu_custom_call.1} parent=15 // pred_check
          %p236 = pneg %p63
        $region18: #{tpu_custom_call.1} parent=15 // pred_check_branch
          %238 = sbr.rel (%p236) target = $region20
        $region19: #{tpu_custom_call.1} parent=15 // pred_region
          %s239 = sand.u32 %s53, 1
          %s240 = scalar_lea.sflag [#allocation4], %s239
          %s241 = sand.u32 %s53, 1
          %s242 = smul.addr %s241, 64
          %s243 = scalar_lea.vmem [#allocation3], %s242
          %s244 = smul.u32 %s27, 8
          %s245 = sadd.s32 %s244, %s28
          %s247 = ssub.s32 1024, 1024
          %248 = vsyncadd %s240, %s247
          %s249 = smul.addr %s245, 16
          %s250 = smul.addr %s249, 64
          %s251 = scalar_lea.hbm %s0, %s250
          %s252 = sshll.u32 %s243, 4
          %s253 = int_to_ptr.vmem [resolvable:$true] %s252
          %258 = dma.hbm_to_vmem [thread:$0]  %s251, 1024, %s253, %s240, 64, 64, 4
        $region20: #{tpu_custom_call.1} parent=15 // pred_fallthru
          _
        // Predicated region
        $region21: #{tpu_custom_call.1} parent=15 // pred_check
          %p259 = pneg %p103
        $region22: #{tpu_custom_call.1} parent=15 // pred_check_branch
          %261 = sbr.rel (%p259) target = $region24
        $region23: #{tpu_custom_call.1} parent=15 // pred_region
          %s262 = sand.u32 %s20, 1
          %s263 = scalar_lea.sflag [#allocation7], %s262
          %s264 = sand.u32 %s93, 1
          %s265 = smul.addr %s264, 128
          %s266 = scalar_lea.vmem [#allocation6], %s265
          %s267 = smul.u32 %s27, 8
          %s268 = sadd.s32 %s267, %s28
          %p269 = scmp.gt.s32.totalorder %s29, 0
          %s270 = scalar_select %p269, %s29, 0
          %p271 = scmp.lt.s32.totalorder %s270, 1
          %s272 = scalar_select %p271, %s270, 1
          %s273 = smul.u32 2, %s272
          %s275 = ssub.s32 2048, 2048
          %276 = vsyncadd %s263, %s275
          %s277 = smul.addr %s268, 64
          %s278 = sadd.s32 %s273, %s277
          %s279 = smul.addr %s278, 64
          %s280 = scalar_lea.hbm %s1, %s279
          %s281 = sshll.u32 %s266, 4
          %s282 = int_to_ptr.vmem [resolvable:$true] %s281
          %287 = dma.hbm_to_vmem [thread:$0]  %s280, 2048, %s282, %s263, 256, 128, 8
        $region24: #{tpu_custom_call.1} parent=15 // pred_fallthru
          _
        // Predicated region
        $region25: #{tpu_custom_call.1} parent=15 // pred_check
          %p288 = pneg %p143
        $region26: #{tpu_custom_call.1} parent=15 // pred_check_branch
          %290 = sbr.rel (%p288) target = $region28
        $region27: #{tpu_custom_call.1} parent=15 // pred_region
          %s291 = sand.u32 %s20, 1
          %s292 = scalar_lea.sflag [#allocation7], %s291
          %s293 = sand.u32 %s133, 1
          %s294 = smul.addr %s293, 128
          %s295 = scalar_lea.vmem [#allocation8], %s294
          %s296 = smul.u32 %s27, 8
          %s297 = sadd.s32 %s296, %s28
          %p298 = scmp.gt.s32.totalorder %s29, 0
          %s299 = scalar_select %p298, %s29, 0
          %p300 = scmp.lt.s32.totalorder %s299, 1
          %s301 = scalar_select %p300, %s299, 1
          %s302 = smul.u32 32, %s301
          %s304 = ssub.s32 2048, 2048
          %305 = vsyncadd %s292, %s304
          %s306 = smul.addr %s297, 64
          %s307 = sadd.s32 %s302, %s306
          %s308 = smul.addr %s307, 64
          %s309 = scalar_lea.hbm %s2, %s308
          %s310 = sshll.u32 %s295, 4
          %s311 = int_to_ptr.vmem [resolvable:$true] %s310
          %316 = dma.hbm_to_vmem [thread:$0]  %s309, 2048, %s311, %s292, 64, 64, 4
        $region28: #{tpu_custom_call.1} parent=15 // pred_fallthru
          _
        // Predicated region
        $region29: #{tpu_custom_call.1} parent=15 // pred_check
          %p317 = pneg %p185
        $region30: #{tpu_custom_call.1} parent=15 // pred_check_branch
          %319 = sbr.rel (%p317) target = $region32
        $region31: #{tpu_custom_call.1} parent=15 // pred_region
          %s320 = sand.u32 %s175, 1
          %s321 = scalar_lea.sflag [#allocation10], %s320
          %s322 = sand.u32 %s175, 1
          %s323 = smul.addr %s322, 64
          %s324 = scalar_lea.vmem [#allocation9], %s323
          %s325 = smul.u32 %s27, 8
          %s326 = sadd.s32 %s325, %s28
          %s327 = ssub.s32 %s29, 2
          %p328 = scmp.gt.s32.totalorder %s327, 0
          %s329 = scalar_select %p328, %s327, 0
          %p330 = scmp.lt.s32.totalorder %s329, 1
          %s331 = scalar_select %p330, %s329, 1
          %s332 = smul.u32 16, %s331
          %s334 = ssub.s32 1024, 1024
          %335 = vsyncadd %s321, %s334
          %s336 = smul.addr %s326, 32
          %s337 = sadd.s32 %s332, %s336
          %s338 = smul.addr %s337, 64
          %s339 = scalar_lea.hbm %s3, %s338
          %s340 = sshll.u32 %s324, 4
          %s341 = int_to_ptr.vmem [resolvable:$true] %s340
          %346 = dma.hbm_to_vmem [thread:$0]  %s339, 1024, %s341, %s321, 64, 64, 4
        $region32: #{tpu_custom_call.1} parent=15 // pred_fallthru
          _
      $region16: #{tpu_custom_call.1} parent=5 // pred_fallthru
        _
      %p347 = scmp.le.s32.totalorder 1, %s20
      %p348 = scmp.lt.s32.totalorder %s20, 33
      %p349 = pnand %p347, %p348
      %p350 = pneg %p349
      // Predicated region
      $region33: #{tpu_custom_call.1} parent=5 // pred_check
        _
      $region34: #{tpu_custom_call.1} parent=5 // pred_check_branch
        %352 = sbr.rel (%p349) target = $region36
      $region35: #{tpu_custom_call.1} parent=5 // pred_region
        %s353 = ssub.s32 %s20, 1
        %s354 = sand.u32 %s56, 1
        %s355 = scalar_lea.sflag [#allocation4], %s354
        %s356 = sand.u32 %s56, 1
        %s357 = smul.addr %s356, 64
        %s358 = scalar_lea.vmem [#allocation3], %s357
        // Predicated region
        $region37: #{tpu_custom_call.1} parent=35 // pred_check
          %p359 = pneg %p69
        $region38: #{tpu_custom_call.1} parent=35 // pred_check_branch
          %361 = sbr.rel (%p359) target = $region40
        $region39: #{tpu_custom_call.1} parent=35 // pred_region
          %362 = dma.done %s355, 1024
        $region40: #{tpu_custom_call.1} parent=35 // pred_fallthru
          _
        %s363 = sand.u32 %s25, 1
        %s364 = scalar_lea.sflag [#allocation7], %s363
        %s365 = sand.u32 %s96, 1
        %s366 = smul.addr %s365, 128
        %s367 = scalar_lea.vmem [#allocation6], %s366
        // Predicated region
        $region41: #{tpu_custom_call.1} parent=35 // pred_check
          %p368 = pneg %p109
        $region42: #{tpu_custom_call.1} parent=35 // pred_check_branch
          %370 = sbr.rel (%p368) target = $region44
        $region43: #{tpu_custom_call.1} parent=35 // pred_region
          %371 = dma.done %s364, 2048
        $region44: #{tpu_custom_call.1} parent=35 // pred_fallthru
          _
        %s372 = sand.u32 %s25, 1
        %s373 = scalar_lea.sflag [#allocation7], %s372
        %s374 = sand.u32 %s136, 1
        %s375 = smul.addr %s374, 128
        %s376 = scalar_lea.vmem [#allocation8], %s375
        // Predicated region
        $region45: #{tpu_custom_call.1} parent=35 // pred_check
          %p377 = pneg %p149
        $region46: #{tpu_custom_call.1} parent=35 // pred_check_branch
          %379 = sbr.rel (%p377) target = $region48
        $region47: #{tpu_custom_call.1} parent=35 // pred_region
          %380 = dma.done %s373, 2048
        $region48: #{tpu_custom_call.1} parent=35 // pred_fallthru
          _
        %s381 = sand.u32 %s178, 1
        %s382 = scalar_lea.sflag [#allocation10], %s381
        %s383 = sand.u32 %s178, 1
        %s384 = smul.addr %s383, 64
        %s385 = scalar_lea.vmem [#allocation9], %s384
        // Predicated region
        $region49: #{tpu_custom_call.1} parent=35 // pred_check
          %p386 = pneg %p191
        $region50: #{tpu_custom_call.1} parent=35 // pred_check_branch
          %388 = sbr.rel (%p386) target = $region52
        $region51: #{tpu_custom_call.1} parent=35 // pred_region
          %389 = dma.done %s382, 1024
        $region52: #{tpu_custom_call.1} parent=35 // pred_fallthru
          _
        %s390 = sand.u32 %s56, 1
        %s391 = scalar_lea.sflag [#allocation4], %s390
        %s392 = sand.u32 %s56, 1
        %s393 = smul.addr %s392, 64
        %s394 = scalar_lea.vmem [#allocation3], %s393
        %p395 = pneg %p69
        %p396 = pneg %p66
        %s397 = sand.u32 %s25, 1
        %s398 = scalar_lea.sflag [#allocation7], %s397
        %s399 = sand.u32 %s96, 1
        %s400 = smul.addr %s399, 128
        %s401 = scalar_lea.vmem [#allocation6], %s400
        %p402 = pneg %p109
        %p403 = pneg %p106
        %s404 = sand.u32 %s25, 1
        %s405 = scalar_lea.sflag [#allocation7], %s404
        %s406 = sand.u32 %s136, 1
        %s407 = smul.addr %s406, 128
        %s408 = scalar_lea.vmem [#allocation8], %s407
        %p409 = pneg %p149
        %p410 = pneg %p146
        %s411 = sand.u32 %s178, 1
        %s412 = scalar_lea.sflag [#allocation10], %s411
        %s413 = sand.u32 %s178, 1
        %s414 = smul.addr %s413, 64
        %s415 = scalar_lea.vmem [#allocation9], %s414
        %p416 = pneg %p191
        %p417 = pneg %p188
        %p418 = pneg %p217
        %p419 = pneg %p214
        %s420 = smul.u32 %s30, 8
        %s421 = sadd.s32 %s420, %s31
        %s422 = smul.u32 %s30, 8
        %s423 = sadd.s32 %s422, %s31
        %p424 = scmp.gt.s32.totalorder %s32, 0
        %s425 = scalar_select %p424, %s32, 0
        %p426 = scmp.lt.s32.totalorder %s425, 1
        %s427 = scalar_select %p426, %s425, 1
        %s428 = smul.u32 2, %s427
        %s429 = smul.u32 %s30, 8
        %s430 = sadd.s32 %s429, %s31
        %p431 = scmp.gt.s32.totalorder %s32, 0
        %s432 = scalar_select %p431, %s32, 0
        %p433 = scmp.lt.s32.totalorder %s432, 1
        %s434 = scalar_select %p433, %s432, 1
        %s435 = smul.u32 32, %s434
        %s436 = smul.u32 %s30, 8
        %s437 = sadd.s32 %s436, %s31
        %s438 = ssub.s32 %s32, 2
        %p439 = scmp.gt.s32.totalorder %s438, 0
        %s440 = scalar_select %p439, %s438, 0
        %p441 = scmp.lt.s32.totalorder %s440, 1
        %s442 = scalar_select %p441, %s440, 1
        %s443 = smul.u32 16, %s442
        %p445 = scmp.eq.s32.totalorder %s31, 0
        %p446 = scmp.eq.s32.totalorder %s32, 0
        %p447 = pnand %p445, %p446
        %p448 = pneg %p447
        // Predicated region
        $region53: #{tpu_custom_call.1} parent=35 // pred_check
          _
        $region54: #{tpu_custom_call.1} parent=35 // pred_check_branch
          %450 = sbr.rel (%p447) target = $region56
        $region55: #{tpu_custom_call.1} parent=35 // pred_region
          %451 = vst [vmem:[#allocation11] sm:$0xff] 0.0
          %452 = vst [vmem:[#allocation11 + $0x8] sm:$0xff] 0.0
          %453 = vst [vmem:[#allocation11 + $0x10] sm:$0xff] 0.0
          %454 = vst [vmem:[#allocation11 + $0x18] sm:$0xff] 0.0
          %455 = vst [vmem:[#allocation11 + $0x20] sm:$0xff] 0.0
          %456 = vst [vmem:[#allocation11 + $0x28] sm:$0xff] 0.0
          %457 = vst [vmem:[#allocation11 + $0x30] sm:$0xff] 0.0
          %458 = vst [vmem:[#allocation11 + $0x38] sm:$0xff] 0.0
          %459 = vst [vmem:[#allocation11 + $0x40] sm:$0xff] 0.0
          %460 = vst [vmem:[#allocation11 + $0x48] sm:$0xff] 0.0
          %461 = vst [vmem:[#allocation11 + $0x50] sm:$0xff] 0.0
          %462 = vst [vmem:[#allocation11 + $0x58] sm:$0xff] 0.0
          %463 = vst [vmem:[#allocation11 + $0x60] sm:$0xff] 0.0
          %464 = vst [vmem:[#allocation11 + $0x68] sm:$0xff] 0.0
          %465 = vst [vmem:[#allocation11 + $0x70] sm:$0xff] 0.0
          %466 = vst [vmem:[#allocation11 + $0x78] sm:$0xff] 0.0
          %467 = vst [vmem:[#allocation11 + $0x80] sm:$0xff] 0.0
          %468 = vst [vmem:[#allocation11 + $0x88] sm:$0xff] 0.0
          %469 = vst [vmem:[#allocation11 + $0x90] sm:$0xff] 0.0
          %470 = vst [vmem:[#allocation11 + $0x98] sm:$0xff] 0.0
          %471 = vst [vmem:[#allocation11 + $0xa0] sm:$0xff] 0.0
          %472 = vst [vmem:[#allocation11 + $0xa8] sm:$0xff] 0.0
          %473 = vst [vmem:[#allocation11 + $0xb0] sm:$0xff] 0.0
          %474 = vst [vmem:[#allocation11 + $0xb8] sm:$0xff] 0.0
          %475 = vst [vmem:[#allocation11 + $0xc0] sm:$0xff] 0.0
          %476 = vst [vmem:[#allocation11 + $0xc8] sm:$0xff] 0.0
          %477 = vst [vmem:[#allocation11 + $0xd0] sm:$0xff] 0.0
          %478 = vst [vmem:[#allocation11 + $0xd8] sm:$0xff] 0.0
          %479 = vst [vmem:[#allocation11 + $0xe0] sm:$0xff] 0.0
          %480 = vst [vmem:[#allocation11 + $0xe8] sm:$0xff] 0.0
          %481 = vst [vmem:[#allocation11 + $0xf0] sm:$0xff] 0.0
          %482 = vst [vmem:[#allocation11 + $0xf8] sm:$0xff] 0.0
        $region56: #{tpu_custom_call.1} parent=35 // pred_fallthru
          _
        // Predicated region
        $region57: #{tpu_custom_call.1} parent=35 // pred_check
          %p483 = pneg %p446
        $region58: #{tpu_custom_call.1} parent=35 // pred_check_branch
          %485 = sbr.rel (%p483) target = $region60
        $region59: #{tpu_custom_call.1} parent=35 // pred_region
          %486 = vst [vmem:[#allocation2] sm:$0xff] 0.0
          %487 = vst [vmem:[#allocation2 + $0x8] sm:$0xff] 0.0
          %488 = vst [vmem:[#allocation2 + $0x10] sm:$0xff] 0.0
          %489 = vst [vmem:[#allocation2 + $0x18] sm:$0xff] 0.0
          %490 = vst [vmem:[#allocation2 + $0x20] sm:$0xff] 0.0
          %491 = vst [vmem:[#allocation2 + $0x28] sm:$0xff] 0.0
          %492 = vst [vmem:[#allocation2 + $0x30] sm:$0xff] 0.0
          %493 = vst [vmem:[#allocation2 + $0x38] sm:$0xff] 0.0
          %494 = vst [vmem:[#allocation2 + $0x40] sm:$0xff] 0.0
          %495 = vst [vmem:[#allocation2 + $0x48] sm:$0xff] 0.0
          %496 = vst [vmem:[#allocation2 + $0x50] sm:$0xff] 0.0
          %497 = vst [vmem:[#allocation2 + $0x58] sm:$0xff] 0.0
          %498 = vst [vmem:[#allocation2 + $0x60] sm:$0xff] 0.0
          %499 = vst [vmem:[#allocation2 + $0x68] sm:$0xff] 0.0
          %500 = vst [vmem:[#allocation2 + $0x70] sm:$0xff] 0.0
          %501 = vst [vmem:[#allocation2 + $0x78] sm:$0xff] 0.0
        $region60: #{tpu_custom_call.1} parent=35 // pred_fallthru
          _
        %p502 = scmp.lt.s32.totalorder %s32, 2
        // Predicated region
        $region61: #{tpu_custom_call.1} parent=35 // pred_check
          %p503 = pneg %p502
        $region62: #{tpu_custom_call.1} parent=35 // pred_check_branch
          %505 = sbr.rel (%p503) target = $region64
        $region63: #{tpu_custom_call.1} parent=35 // pred_region
          %v506 = vld [vmem:[%s358] sm:$0xf]
          %v507 = vld [vmem:[%s358 + $0x4] sm:$0xf]
          %v508 = vld [vmem:[%s358 + $0x8] sm:$0xf]
          %v509 = vld [vmem:[%s358 + $0xc] sm:$0xf]
          %v510 = vld [vmem:[%s358 + $0x10] sm:$0xf]
          %v511 = vld [vmem:[%s358 + $0x14] sm:$0xf]
          %v512 = vld [vmem:[%s358 + $0x18] sm:$0xf]
          %v513 = vld [vmem:[%s358 + $0x1c] sm:$0xf]
          %v514 = vld [vmem:[%s358 + $0x20] sm:$0xf]
          %v515 = vld [vmem:[%s358 + $0x24] sm:$0xf]
          %v516 = vld [vmem:[%s358 + $0x28] sm:$0xf]
          %v517 = vld [vmem:[%s358 + $0x2c] sm:$0xf]
          %v518 = vld [vmem:[%s358 + $0x30] sm:$0xf]
          %v519 = vld [vmem:[%s358 + $0x34] sm:$0xf]
          %v520 = vld [vmem:[%s358 + $0x38] sm:$0xf]
          %v521 = vld [vmem:[%s358 + $0x3c] sm:$0xf]
          %v522 = vld [vmem:[%s367] sm:$0xff]
          %v523 = vld [vmem:[%s367 + $0x8] sm:$0xff]
          %v524 = vld [vmem:[%s367 + $0x10] sm:$0xff]
          %v525 = vld [vmem:[%s367 + $0x18] sm:$0xff]
          %v526 = vld [vmem:[%s367 + $0x20] sm:$0xff]
          %v527 = vld [vmem:[%s367 + $0x28] sm:$0xff]
          %v528 = vld [vmem:[%s367 + $0x30] sm:$0xff]
          %v529 = vld [vmem:[%s367 + $0x38] sm:$0xff]
          %v530 = vld [vmem:[%s367 + $0x40] sm:$0xff]
          %v531 = vld [vmem:[%s367 + $0x48] sm:$0xff]
          %v532 = vld [vmem:[%s367 + $0x50] sm:$0xff]
          %v533 = vld [vmem:[%s367 + $0x58] sm:$0xff]
          %v534 = vld [vmem:[%s367 + $0x60] sm:$0xff]
          %v535 = vld [vmem:[%s367 + $0x68] sm:$0xff]
          %v536 = vld [vmem:[%s367 + $0x70] sm:$0xff]
          %v537 = vld [vmem:[%s367 + $0x78] sm:$0xff]
          %v554 = vunpack.c.l.b16 %v506
          %v555 = vunpack.c.l.b16 %v507
          %v556 = vunpack.c.l.b16 %v508
          %v557 = vunpack.c.l.b16 %v509
          %v558 = vunpack.c.l.b16 %v510
          %v559 = vunpack.c.l.b16 %v511
          %v560 = vunpack.c.l.b16 %v512
          %v561 = vunpack.c.l.b16 %v513
          %v562 = vunpack.c.l.b16 %v514
          %v563 = vunpack.c.l.b16 %v515
          %v564 = vunpack.c.l.b16 %v516
          %v565 = vunpack.c.l.b16 %v517
          %v566 = vunpack.c.l.b16 %v518
          %v567 = vunpack.c.l.b16 %v519
          %v568 = vunpack.c.l.b16 %v520
          %v569 = vunpack.c.l.b16 %v521
          %v570 = vpack.c.b16 %v555, %v554
          %v571 = vpack.c.b16 %v557, %v556
          %v572 = vpack.c.b16 %v559, %v558
          %v573 = vpack.c.b16 %v561, %v560
          %v574 = vpack.c.b16 %v563, %v562
          %v575 = vpack.c.b16 %v565, %v564
          %v576 = vpack.c.b16 %v567, %v566
          %v577 = vpack.c.b16 %v569, %v568
          %v602 = vunpack.c.l.b16 %v522
          %v603 = vunpack.c.h.b16 %v522
          %v604 = vunpack.c.l.b16 %v523
          %v605 = vunpack.c.h.b16 %v523
          %v606 = vunpack.c.l.b16 %v524
          %v607 = vunpack.c.h.b16 %v524
          %v608 = vunpack.c.l.b16 %v525
          %v609 = vunpack.c.h.b16 %v525
          %v610 = vunpack.c.l.b16 %v526
          %v611 = vunpack.c.h.b16 %v526
          %v612 = vunpack.c.l.b16 %v527
          %v613 = vunpack.c.h.b16 %v527
          %v614 = vunpack.c.l.b16 %v528
          %v615 = vunpack.c.h.b16 %v528
          %v616 = vunpack.c.l.b16 %v529
          %v617 = vunpack.c.h.b16 %v529
          %v618 = vunpack.c.l.b16 %v530
          %v619 = vunpack.c.h.b16 %v530
          %v620 = vunpack.c.l.b16 %v531
          %v621 = vunpack.c.h.b16 %v531
          %v622 = vunpack.c.l.b16 %v532
          %v623 = vunpack.c.h.b16 %v532
          %v624 = vunpack.c.l.b16 %v533
          %v625 = vunpack.c.h.b16 %v533
          %v626 = vunpack.c.l.b16 %v534
          %v627 = vunpack.c.h.b16 %v534
          %v628 = vunpack.c.l.b16 %v535
          %v629 = vunpack.c.h.b16 %v535
          %v630 = vunpack.c.l.b16 %v536
          %v631 = vunpack.c.h.b16 %v536
          %v632 = vunpack.c.l.b16 %v537
          %v633 = vunpack.c.h.b16 %v537
          %v634 = vpack.c.b16 %v604, %v602
          %v635 = vpack.c.b16 %v605, %v603
          %v636 = vpack.c.b16 %v608, %v606
          %v637 = vpack.c.b16 %v609, %v607
          %v638 = vpack.c.b16 %v612, %v610
          %v639 = vpack.c.b16 %v613, %v611
          %v640 = vpack.c.b16 %v616, %v614
          %v641 = vpack.c.b16 %v617, %v615
          %v642 = vpack.c.b16 %v620, %v618
          %v643 = vpack.c.b16 %v621, %v619
          %v644 = vpack.c.b16 %v624, %v622
          %v645 = vpack.c.b16 %v625, %v623
          %v646 = vpack.c.b16 %v628, %v626
          %v647 = vpack.c.b16 %v629, %v627
          %v648 = vpack.c.b16 %v632, %v630
          %v649 = vpack.c.b16 %v633, %v631
          %666 = vmatprep.subr.bf16.mxu0 %v635
          %667 = vmatpush1.bf16.msra.mxu0 %v634
          %668 = vmatprep.subr.bf16.mxu0 %v637
          %669 = vmatpush1.bf16.msra.mxu0 %v636
          %670 = vmatprep.subr.bf16.mxu0 %v639
          %671 = vmatpush1.bf16.msra.mxu0 %v638
          %672 = vmatprep.subr.bf16.mxu0 %v641
          %673 = vmatpush1.bf16.msra.mxu0 %v640
          %674 = vmatprep.subr.bf16.mxu0 %v643
          %675 = vmatpush1.bf16.msra.mxu0 %v642
          %676 = vmatprep.subr.bf16.mxu0 %v645
          %677 = vmatpush1.bf16.msra.mxu0 %v644
          %678 = vmatprep.subr.bf16.mxu0 %v647
          %679 = vmatpush1.bf16.msra.mxu0 %v646
          %680 = vmatprep.subr.bf16.mxu0 %v649
          %681 = vmatpush1.bf16.msra.mxu0 %v648
          %682 = vmatprep.subr.bf16.mxu0 0
          %683 = vmatpush1.bf16.msra.mxu0 0
          %684 = vmatprep.subr.bf16.mxu0 0
          %685 = vmatpush1.bf16.msra.mxu0 0
          %686 = vmatprep.subr.bf16.mxu0 0
          %687 = vmatpush1.bf16.msra.mxu0 0
          %688 = vmatprep.subr.bf16.mxu0 0
          %689 = vmatpush1.bf16.msra.mxu0 0
          %690 = vmatprep.subr.bf16.mxu0 0
          %691 = vmatpush1.bf16.msra.mxu0 0
          %692 = vmatprep.subr.bf16.mxu0 0
          %693 = vmatpush1.bf16.msra.mxu0 0
          %694 = vmatprep.subr.bf16.mxu0 0
          %695 = vmatpush1.bf16.msra.mxu0 0
          %696 = vmatprep.subr.bf16.mxu0 0
          %697 = vmatpush1.bf16.msra.mxu0 0
          %698 = vmatprep.mubr.bf16.mxu0 0
          %699 = vmatmul.mubr.bf16.gmra.mrb[0].mxu0 %v570
          %v700 = vpop.f32.mrb[0].mxu0
          %v701 = vadd.f32 0.0, %v700
          %v702 = vpop.f32.mrb[0].mxu0
          %v703 = vadd.f32 0.0, %v702
          %v704 = vpop.f32.mrb[0].mxu0
          %v705 = vadd.f32 0.0, %v704
          %v706 = vpop.f32.mrb[0].mxu0
          %v707 = vadd.f32 0.0, %v706
          %708 = vmatprep.mubr.bf16.mxu0 0
          %709 = vmatmul.mubr.bf16.gmra.mrb[0].mxu0 %v571
          %v710 = vpop.f32.mrb[0].mxu0
          %v711 = vadd.f32 0.0, %v710
          %v712 = vpop.f32.mrb[0].mxu0
          %v713 = vadd.f32 0.0, %v712
          %v714 = vpop.f32.mrb[0].mxu0
          %v715 = vadd.f32 0.0, %v714
          %v716 = vpop.f32.mrb[0].mxu0
          %v717 = vadd.f32 0.0, %v716
          %718 = vmatprep.mubr.bf16.mxu0 0
          %719 = vmatmul.mubr.bf16.gmra.mrb[0].mxu0 %v572
          %v720 = vpop.f32.mrb[0].mxu0
          %v721 = vadd.f32 0.0, %v720
          %v722 = vpop.f32.mrb[0].mxu0
          %v723 = vadd.f32 0.0, %v722
          %v724 = vpop.f32.mrb[0].mxu0
          %v725 = vadd.f32 0.0, %v724
          %v726 = vpop.f32.mrb[0].mxu0
          %v727 = vadd.f32 0.0, %v726
          %728 = vmatprep.mubr.bf16.mxu0 0
          %729 = vmatmul.mubr.bf16.gmra.mrb[0].mxu0 %v573
          %v730 = vpop.f32.mrb[0].mxu0
          %v731 = vadd.f32 0.0, %v730
          %v732 = vpop.f32.mrb[0].mxu0
          %v733 = vadd.f32 0.0, %v732
          %v734 = vpop.f32.mrb[0].mxu0
          %v735 = vadd.f32 0.0, %v734
          %v736 = vpop.f32.mrb[0].mxu0
          %v737 = vadd.f32 0.0, %v736
          %738 = vmatprep.mubr.bf16.mxu0 0
          %739 = vmatmul.mubr.bf16.gmra.mrb[0].mxu0 %v574
          %v740 = vpop.f32.mrb[0].mxu0
          %v741 = vadd.f32 0.0, %v740
          %v742 = vpop.f32.mrb[0].mxu0
          %v743 = vadd.f32 0.0, %v742
          %v744 = vpop.f32.mrb[0].mxu0
          %v745 = vadd.f32 0.0, %v744
          %v746 = vpop.f32.mrb[0].mxu0
          %v747 = vadd.f32 0.0, %v746
          %748 = vmatprep.mubr.bf16.mxu0 0
          %749 = vmatmul.mubr.bf16.gmra.mrb[0].mxu0 %v575
          %v750 = vpop.f32.mrb[0].mxu0
          %v751 = vadd.f32 0.0, %v750
          %v752 = vpop.f32.mrb[0].mxu0
          %v753 = vadd.f32 0.0, %v752
          %v754 = vpop.f32.mrb[0].mxu0
          %v755 = vadd.f32 0.0, %v754
          %v756 = vpop.f32.mrb[0].mxu0
          %v757 = vadd.f32 0.0, %v756
          %758 = vmatprep.mubr.bf16.mxu0 0
          %759 = vmatmul.mubr.bf16.gmra.mrb[0].mxu0 %v576
          %v760 = vpop.f32.mrb[0].mxu0
          %v761 = vadd.f32 0.0, %v760
          %v762 = vpop.f32.mrb[0].mxu0
          %v763 = vadd.f32 0.0, %v762
          %v764 = vpop.f32.mrb[0].mxu0
          %v765 = vadd.f32 0.0, %v764
          %v766 = vpop.f32.mrb[0].mxu0
          %v767 = vadd.f32 0.0, %v766
          %768 = vmatprep.mubr.bf16.mxu0 0
          %769 = vmatmul.mubr.bf16.gmra.mrb[0].mxu0 %v577
          %v770 = vpop.f32.mrb[0].mxu0
          %v771 = vadd.f32 0.0, %v770
          %v772 = vpop.f32.mrb[0].mxu0
          %v773 = vadd.f32 0.0, %v772
          %v774 = vpop.f32.mrb[0].mxu0
          %v775 = vadd.f32 0.0, %v774
          %v776 = vpop.f32.mrb[0].mxu0
          %v777 = vadd.f32 0.0, %v776
          %778 = vdwg.mxu0
          %v779 = vmul.f32 %v701, %v701
          %v780 = vmul.f32 %v703, %v703
          %v781 = vmul.f32 %v705, %v705
          %v782 = vmul.f32 %v707, %v707
          %v783 = vmul.f32 %v711, %v711
          %v784 = vmul.f32 %v713, %v713
          %v785 = vmul.f32 %v715, %v715
          %v786 = vmul.f32 %v717, %v717
          %v787 = vmul.f32 %v721, %v721
          %v788 = vmul.f32 %v723, %v723
          %v789 = vmul.f32 %v725, %v725
          %v790 = vmul.f32 %v727, %v727
          %v791 = vmul.f32 %v731, %v731
          %v792 = vmul.f32 %v733, %v733
          %v793 = vmul.f32 %v735, %v735
          %v794 = vmul.f32 %v737, %v737
          %v795 = vmul.f32 %v741, %v741
          %v796 = vmul.f32 %v743, %v743
          %v797 = vmul.f32 %v745, %v745
          %v798 = vmul.f32 %v747, %v747
          %v799 = vmul.f32 %v751, %v751
          %v800 = vmul.f32 %v753, %v753
          %v801 = vmul.f32 %v755, %v755
          %v802 = vmul.f32 %v757, %v757
          %v803 = vmul.f32 %v761, %v761
          %v804 = vmul.f32 %v763, %v763
          %v805 = vmul.f32 %v765, %v765
          %v806 = vmul.f32 %v767, %v767
          %v807 = vmul.f32 %v771, %v771
          %v808 = vmul.f32 %v773, %v773
          %v809 = vmul.f32 %v775, %v775
          %v810 = vmul.f32 %v777, %v777
          %v811 = vmul.f32 %v701, %v779
          %v812 = vmul.f32 %v703, %v780
          %v813 = vmul.f32 %v705, %v781
          %v814 = vmul.f32 %v707, %v782
          %v815 = vmul.f32 %v711, %v783
          %v816 = vmul.f32 %v713, %v784
          %v817 = vmul.f32 %v715, %v785
          %v818 = vmul.f32 %v717, %v786
          %v819 = vmul.f32 %v721, %v787
          %v820 = vmul.f32 %v723, %v788
          %v821 = vmul.f32 %v725, %v789
          %v822 = vmul.f32 %v727, %v790
          %v823 = vmul.f32 %v731, %v791
          %v824 = vmul.f32 %v733, %v792
          %v825 = vmul.f32 %v735, %v793
          %v826 = vmul.f32 %v737, %v794
          %v827 = vmul.f32 %v741, %v795
          %v828 = vmul.f32 %v743, %v796
          %v829 = vmul.f32 %v745, %v797
          %v830 = vmul.f32 %v747, %v798
          %v831 = vmul.f32 %v751, %v799
          %v832 = vmul.f32 %v753, %v800
          %v833 = vmul.f32 %v755, %v801
          %v834 = vmul.f32 %v757, %v802
          %v835 = vmul.f32 %v761, %v803
          %v836 = vmul.f32 %v763, %v804
          %v837 = vmul.f32 %v765, %v805
          %v838 = vmul.f32 %v767, %v806
          %v839 = vmul.f32 %v771, %v807
          %v840 = vmul.f32 %v773, %v808
          %v841 = vmul.f32 %v775, %v809
          %v842 = vmul.f32 %v777, %v810
          %v843 = vmul.f32 %v811, 0.044715
          %v844 = vmul.f32 %v812, 0.044715
          %v845 = vmul.f32 %v813, 0.044715
          %v846 = vmul.f32 %v814, 0.044715
          %v847 = vmul.f32 %v815, 0.044715
          %v848 = vmul.f32 %v816, 0.044715
          %v849 = vmul.f32 %v817, 0.044715
          %v850 = vmul.f32 %v818, 0.044715
          %v851 = vmul.f32 %v819, 0.044715
          %v852 = vmul.f32 %v820, 0.044715
          %v853 = vmul.f32 %v821, 0.044715
          %v854 = vmul.f32 %v822, 0.044715
          %v855 = vmul.f32 %v823, 0.044715
          %v856 = vmul.f32 %v824, 0.044715
          %v857 = vmul.f32 %v825, 0.044715
          %v858 = vmul.f32 %v826, 0.044715
          %v859 = vmul.f32 %v827, 0.044715
          %v860 = vmul.f32 %v828, 0.044715
          %v861 = vmul.f32 %v829, 0.044715
          %v862 = vmul.f32 %v830, 0.044715
          %v863 = vmul.f32 %v831, 0.044715
          %v864 = vmul.f32 %v832, 0.044715
          %v865 = vmul.f32 %v833, 0.044715
          %v866 = vmul.f32 %v834, 0.044715
          %v867 = vmul.f32 %v835, 0.044715
          %v868 = vmul.f32 %v836, 0.044715
          %v869 = vmul.f32 %v837, 0.044715
          %v870 = vmul.f32 %v838, 0.044715
          %v871 = vmul.f32 %v839, 0.044715
          %v872 = vmul.f32 %v840, 0.044715
          %v873 = vmul.f32 %v841, 0.044715
          %v874 = vmul.f32 %v842, 0.044715
          %v875 = vadd.f32 %v701, %v843
          %v876 = vadd.f32 %v703, %v844
          %v877 = vadd.f32 %v705, %v845
          %v878 = vadd.f32 %v707, %v846
          %v879 = vadd.f32 %v711, %v847
          %v880 = vadd.f32 %v713, %v848
          %v881 = vadd.f32 %v715, %v849
          %v882 = vadd.f32 %v717, %v850
          %v883 = vadd.f32 %v721, %v851
          %v884 = vadd.f32 %v723, %v852
          %v885 = vadd.f32 %v725, %v853
          %v886 = vadd.f32 %v727, %v854
          %v887 = vadd.f32 %v731, %v855
          %v888 = vadd.f32 %v733, %v856
          %v889 = vadd.f32 %v735, %v857
          %v890 = vadd.f32 %v737, %v858
          %v891 = vadd.f32 %v741, %v859
          %v892 = vadd.f32 %v743, %v860
          %v893 = vadd.f32 %v745, %v861
          %v894 = vadd.f32 %v747, %v862
          %v895 = vadd.f32 %v751, %v863
          %v896 = vadd.f32 %v753, %v864
          %v897 = vadd.f32 %v755, %v865
          %v898 = vadd.f32 %v757, %v866
          %v899 = vadd.f32 %v761, %v867
          %v900 = vadd.f32 %v763, %v868
          %v901 = vadd.f32 %v765, %v869
          %v902 = vadd.f32 %v767, %v870
          %v903 = vadd.f32 %v771, %v871
          %v904 = vadd.f32 %v773, %v872
          %v905 = vadd.f32 %v775, %v873
          %v906 = vadd.f32 %v777, %v874
          %v907 = vmul.f32 %v875, 0.7978846
          %v908 = vmul.f32 %v876, 0.7978846
          %v909 = vmul.f32 %v877, 0.7978846
          %v910 = vmul.f32 %v878, 0.7978846
          %v911 = vmul.f32 %v879, 0.7978846
          %v912 = vmul.f32 %v880, 0.7978846
          %v913 = vmul.f32 %v881, 0.7978846
          %v914 = vmul.f32 %v882, 0.7978846
          %v915 = vmul.f32 %v883, 0.7978846
          %v916 = vmul.f32 %v884, 0.7978846
          %v917 = vmul.f32 %v885, 0.7978846
          %v918 = vmul.f32 %v886, 0.7978846
          %v919 = vmul.f32 %v887, 0.7978846
          %v920 = vmul.f32 %v888, 0.7978846
          %v921 = vmul.f32 %v889, 0.7978846
          %v922 = vmul.f32 %v890, 0.7978846
          %v923 = vmul.f32 %v891, 0.7978846
          %v924 = vmul.f32 %v892, 0.7978846
          %v925 = vmul.f32 %v893, 0.7978846
          %v926 = vmul.f32 %v894, 0.7978846
          %v927 = vmul.f32 %v895, 0.7978846
          %v928 = vmul.f32 %v896, 0.7978846
          %v929 = vmul.f32 %v897, 0.7978846
          %v930 = vmul.f32 %v898, 0.7978846
          %v931 = vmul.f32 %v899, 0.7978846
          %v932 = vmul.f32 %v900, 0.7978846
          %v933 = vmul.f32 %v901, 0.7978846
          %v934 = vmul.f32 %v902, 0.7978846
          %v935 = vmul.f32 %v903, 0.7978846
          %v936 = vmul.f32 %v904, 0.7978846
          %v937 = vmul.f32 %v905, 0.7978846
          %v938 = vmul.f32 %v906, 0.7978846
          %v939 = vtanh.pop %v907
          %v940 = vtanh.pop %v908
          %v941 = vtanh.pop %v909
          %v942 = vtanh.pop %v910
          %v943 = vtanh.pop %v911
          %v944 = vtanh.pop %v912
          %v945 = vtanh.pop %v913
          %v946 = vtanh.pop %v914
          %v947 = vtanh.pop %v915
          %v948 = vtanh.pop %v916
          %v949 = vtanh.pop %v917
          %v950 = vtanh.pop %v918
          %v951 = vtanh.pop %v919
          %v952 = vtanh.pop %v920
          %v953 = vtanh.pop %v921
          %v954 = vtanh.pop %v922
          %v955 = vtanh.pop %v923
          %v956 = vtanh.pop %v924
          %v957 = vtanh.pop %v925
          %v958 = vtanh.pop %v926
          %v959 = vtanh.pop %v927
          %v960 = vtanh.pop %v928
          %v961 = vtanh.pop %v929
          %v962 = vtanh.pop %v930
          %v963 = vtanh.pop %v931
          %v964 = vtanh.pop %v932
          %v965 = vtanh.pop %v933
          %v966 = vtanh.pop %v934
          %v967 = vtanh.pop %v935
          %v968 = vtanh.pop %v936
          %v969 = vtanh.pop %v937
          %v970 = vtanh.pop %v938
          %v971 = vadd.f32 %v939, 1.0
          %v972 = vadd.f32 %v940, 1.0
          %v973 = vadd.f32 %v941, 1.0
          %v974 = vadd.f32 %v942, 1.0
          %v975 = vadd.f32 %v943, 1.0
          %v976 = vadd.f32 %v944, 1.0
          %v977 = vadd.f32 %v945, 1.0
          %v978 = vadd.f32 %v946, 1.0
          %v979 = vadd.f32 %v947, 1.0
          %v980 = vadd.f32 %v948, 1.0
          %v981 = vadd.f32 %v949, 1.0
          %v982 = vadd.f32 %v950, 1.0
          %v983 = vadd.f32 %v951, 1.0
          %v984 = vadd.f32 %v952, 1.0
          %v985 = vadd.f32 %v953, 1.0
          %v986 = vadd.f32 %v954, 1.0
          %v987 = vadd.f32 %v955, 1.0
          %v988 = vadd.f32 %v956, 1.0
          %v989 = vadd.f32 %v957, 1.0
          %v990 = vadd.f32 %v958, 1.0
          %v991 = vadd.f32 %v959, 1.0
          %v992 = vadd.f32 %v960, 1.0
          %v993 = vadd.f32 %v961, 1.0
          %v994 = vadd.f32 %v962, 1.0
          %v995 = vadd.f32 %v963, 1.0
          %v996 = vadd.f32 %v964, 1.0
          %v997 = vadd.f32 %v965, 1.0
          %v998 = vadd.f32 %v966, 1.0
          %v999 = vadd.f32 %v967, 1.0
          %v1000 = vadd.f32 %v968, 1.0
          %v1001 = vadd.f32 %v969, 1.0
          %v1002 = vadd.f32 %v970, 1.0
          %v1003 = vmul.f32 %v971, 0.5
          %v1004 = vmul.f32 %v972, 0.5
          %v1005 = vmul.f32 %v973, 0.5
          %v1006 = vmul.f32 %v974, 0.5
          %v1007 = vmul.f32 %v975, 0.5
          %v1008 = vmul.f32 %v976, 0.5
          %v1009 = vmul.f32 %v977, 0.5
          %v1010 = vmul.f32 %v978, 0.5
          %v1011 = vmul.f32 %v979, 0.5
          %v1012 = vmul.f32 %v980, 0.5
          %v1013 = vmul.f32 %v981, 0.5
          %v1014 = vmul.f32 %v982, 0.5
          %v1015 = vmul.f32 %v983, 0.5
          %v1016 = vmul.f32 %v984, 0.5
          %v1017 = vmul.f32 %v985, 0.5
          %v1018 = vmul.f32 %v986, 0.5
          %v1019 = vmul.f32 %v987, 0.5
          %v1020 = vmul.f32 %v988, 0.5
          %v1021 = vmul.f32 %v989, 0.5
          %v1022 = vmul.f32 %v990, 0.5
          %v1023 = vmul.f32 %v991, 0.5
          %v1024 = vmul.f32 %v992, 0.5
          %v1025 = vmul.f32 %v993, 0.5
          %v1026 = vmul.f32 %v994, 0.5
          %v1027 = vmul.f32 %v995, 0.5
          %v1028 = vmul.f32 %v996, 0.5
          %v1029 = vmul.f32 %v997, 0.5
          %v1030 = vmul.f32 %v998, 0.5
          %v1031 = vmul.f32 %v999, 0.5
          %v1032 = vmul.f32 %v1000, 0.5
          %v1033 = vmul.f32 %v1001, 0.5
          %v1034 = vmul.f32 %v1002, 0.5
          %v1035 = vmul.f32 %v701, %v1003
          %v1036 = vmul.f32 %v703, %v1004
          %v1037 = vmul.f32 %v705, %v1005
          %v1038 = vmul.f32 %v707, %v1006
          %v1039 = vmul.f32 %v711, %v1007
          %v1040 = vmul.f32 %v713, %v1008
          %v1041 = vmul.f32 %v715, %v1009
          %v1042 = vmul.f32 %v717, %v1010
          %v1043 = vmul.f32 %v721, %v1011
          %v1044 = vmul.f32 %v723, %v1012
          %v1045 = vmul.f32 %v725, %v1013
          %v1046 = vmul.f32 %v727, %v1014
          %v1047 = vmul.f32 %v731, %v1015
          %v1048 = vmul.f32 %v733, %v1016
          %v1049 = vmul.f32 %v735, %v1017
          %v1050 = vmul.f32 %v737, %v1018
          %v1051 = vmul.f32 %v741, %v1019
          %v1052 = vmul.f32 %v743, %v1020
          %v1053 = vmul.f32 %v745, %v1021
          %v1054 = vmul.f32 %v747, %v1022
          %v1055 = vmul.f32 %v751, %v1023
          %v1056 = vmul.f32 %v753, %v1024
          %v1057 = vmul.f32 %v755, %v1025
          %v1058 = vmul.f32 %v757, %v1026
          %v1059 = vmul.f32 %v761, %v1027
          %v1060 = vmul.f32 %v763, %v1028
          %v1061 = vmul.f32 %v765, %v1029
          %v1062 = vmul.f32 %v767, %v1030
          %v1063 = vmul.f32 %v771, %v1031
          %v1064 = vmul.f32 %v773, %v1032
          %v1065 = vmul.f32 %v775, %v1033
          %v1066 = vmul.f32 %v777, %v1034
          %v1067 = vld [vmem:[#allocation2] sm:$0xff]
          %v1068 = vld [vmem:[#allocation2 + $0x8] sm:$0xff]
          %v1069 = vld [vmem:[#allocation2 + $0x10] sm:$0xff]
          %v1070 = vld [vmem:[#allocation2 + $0x18] sm:$0xff]
          %v1071 = vld [vmem:[#allocation2 + $0x20] sm:$0xff]
          %v1072 = vld [vmem:[#allocation2 + $0x28] sm:$0xff]
          %v1073 = vld [vmem:[#allocation2 + $0x30] sm:$0xff]
          %v1074 = vld [vmem:[#allocation2 + $0x38] sm:$0xff]
          %v1075 = vld [vmem:[#allocation2 + $0x40] sm:$0xff]
          %v1076 = vld [vmem:[#allocation2 + $0x48] sm:$0xff]
          %v1077 = vld [vmem:[#allocation2 + $0x50] sm:$0xff]
          %v1078 = vld [vmem:[#allocation2 + $0x58] sm:$0xff]
          %v1079 = vld [vmem:[#allocation2 + $0x60] sm:$0xff]
          %v1080 = vld [vmem:[#allocation2 + $0x68] sm:$0xff]
          %v1081 = vld [vmem:[#allocation2 + $0x70] sm:$0xff]
          %v1082 = vld [vmem:[#allocation2 + $0x78] sm:$0xff]
          %v1083 = vpack.c.bf16 %v1037, %v1035
          %v1084 = vpack.c.bf16 %v1038, %v1036
          %v1085 = vpack.c.bf16 %v1041, %v1039
          %v1086 = vpack.c.bf16 %v1042, %v1040
          %v1087 = vpack.c.bf16 %v1045, %v1043
          %v1088 = vpack.c.bf16 %v1046, %v1044
          %v1089 = vpack.c.bf16 %v1049, %v1047
          %v1090 = vpack.c.bf16 %v1050, %v1048
          %v1091 = vpack.c.bf16 %v1053, %v1051
          %v1092 = vpack.c.bf16 %v1054, %v1052
          %v1093 = vpack.c.bf16 %v1057, %v1055
          %v1094 = vpack.c.bf16 %v1058, %v1056
          %v1095 = vpack.c.bf16 %v1061, %v1059
          %v1096 = vpack.c.bf16 %v1062, %v1060
          %v1097 = vpack.c.bf16 %v1065, %v1063
          %v1098 = vpack.c.bf16 %v1066, %v1064
          %v1099 = vld [vmem:[%s376] sm:$0xf]
          %v1100 = vld [vmem:[%s376 + $0x4] sm:$0xf]
          %v1101 = vld [vmem:[%s376 + $0x8] sm:$0xf]
          %v1102 = vld [vmem:[%s376 + $0xc] sm:$0xf]
          %v1103 = vld [vmem:[%s376 + $0x10] sm:$0xf]
          %v1104 = vld [vmem:[%s376 + $0x14] sm:$0xf]
          %v1105 = vld [vmem:[%s376 + $0x18] sm:$0xf]
          %v1106 = vld [vmem:[%s376 + $0x1c] sm:$0xf]
          %v1107 = vld [vmem:[%s376 + $0x20] sm:$0xf]
          %v1108 = vld [vmem:[%s376 + $0x24] sm:$0xf]
          %v1109 = vld [vmem:[%s376 + $0x28] sm:$0xf]
          %v1110 = vld [vmem:[%s376 + $0x2c] sm:$0xf]
          %v1111 = vld [vmem:[%s376 + $0x30] sm:$0xf]
          %v1112 = vld [vmem:[%s376 + $0x34] sm:$0xf]
          %v1113 = vld [vmem:[%s376 + $0x38] sm:$0xf]
          %v1114 = vld [vmem:[%s376 + $0x3c] sm:$0xf]
          %v1115 = vld [vmem:[%s376 + $0x40] sm:$0xf]
          %v1116 = vld [vmem:[%s376 + $0x44] sm:$0xf]
          %v1117 = vld [vmem:[%s376 + $0x48] sm:$0xf]
          %v1118 = vld [vmem:[%s376 + $0x4c] sm:$0xf]
          %v1119 = vld [vmem:[%s376 + $0x50] sm:$0xf]
          %v1120 = vld [vmem:[%s376 + $0x54] sm:$0xf]
          %v1121 = vld [vmem:[%s376 + $0x58] sm:$0xf]
          %v1122 = vld [vmem:[%s376 + $0x5c] sm:$0xf]
          %v1123 = vld [vmem:[%s376 + $0x60] sm:$0xf]
          %v1124 = vld [vmem:[%s376 + $0x64] sm:$0xf]
          %v1125 = vld [vmem:[%s376 + $0x68] sm:$0xf]
          %v1126 = vld [vmem:[%s376 + $0x6c] sm:$0xf]
          %v1127 = vld [vmem:[%s376 + $0x70] sm:$0xf]
          %v1128 = vld [vmem:[%s376 + $0x74] sm:$0xf]
          %v1129 = vld [vmem:[%s376 + $0x78] sm:$0xf]
          %v1130 = vld [vmem:[%s376 + $0x7c] sm:$0xf]
          %v1163 = vunpack.c.l.b16 %v1099
          %v1164 = vunpack.c.l.b16 %v1100
          %v1165 = vunpack.c.l.b16 %v1101
          %v1166 = vunpack.c.l.b16 %v1102
          %v1167 = vunpack.c.l.b16 %v1103
          %v1168 = vunpack.c.l.b16 %v1104
          %v1169 = vunpack.c.l.b16 %v1105
          %v1170 = vunpack.c.l.b16 %v1106
          %v1171 = vunpack.c.l.b16 %v1107
          %v1172 = vunpack.c.l.b16 %v1108
          %v1173 = vunpack.c.l.b16 %v1109
          %v1174 = vunpack.c.l.b16 %v1110
          %v1175 = vunpack.c.l.b16 %v1111
          %v1176 = vunpack.c.l.b16 %v1112
          %v1177 = vunpack.c.l.b16 %v1113
          %v1178 = vunpack.c.l.b16 %v1114
          %v1179 = vunpack.c.l.b16 %v1115
          %v1180 = vunpack.c.l.b16 %v1116
          %v1181 = vunpack.c.l.b16 %v1117
          %v1182 = vunpack.c.l.b16 %v1118
          %v1183 = vunpack.c.l.b16 %v1119
          %v1184 = vunpack.c.l.b16 %v1120
          %v1185 = vunpack.c.l.b16 %v1121
          %v1186 = vunpack.c.l.b16 %v1122
          %v1187 = vunpack.c.l.b16 %v1123
          %v1188 = vunpack.c.l.b16 %v1124
          %v1189 = vunpack.c.l.b16 %v1125
          %v1190 = vunpack.c.l.b16 %v1126
          %v1191 = vunpack.c.l.b16 %v1127
          %v1192 = vunpack.c.l.b16 %v1128
          %v1193 = vunpack.c.l.b16 %v1129
          %v1194 = vunpack.c.l.b16 %v1130
          %v1195 = vpack.c.b16 %v1164, %v1163
          %v1196 = vpack.c.b16 %v1166, %v1165
          %v1197 = vpack.c.b16 %v1168, %v1167
          %v1198 = vpack.c.b16 %v1170, %v1169
          %v1199 = vpack.c.b16 %v1172, %v1171
          %v1200 = vpack.c.b16 %v1174, %v1173
          %v1201 = vpack.c.b16 %v1176, %v1175
          %v1202 = vpack.c.b16 %v1178, %v1177
          %v1203 = vpack.c.b16 %v1180, %v1179
          %v1204 = vpack.c.b16 %v1182, %v1181
          %v1205 = vpack.c.b16 %v1184, %v1183
          %v1206 = vpack.c.b16 %v1186, %v1185
          %v1207 = vpack.c.b16 %v1188, %v1187
          %v1208 = vpack.c.b16 %v1190, %v1189
          %v1209 = vpack.c.b16 %v1192, %v1191
          %v1210 = vpack.c.b16 %v1194, %v1193
          %1227 = vmatprep.subr.bf16.mxu0 0
          %1228 = vmatpush1.bf16.msra.mxu0 %v1195
          %1229 = vmatprep.subr.bf16.mxu0 0
          %1230 = vmatpush1.bf16.msra.mxu0 %v1196
          %1231 = vmatprep.subr.bf16.mxu0 0
          %1232 = vmatpush1.bf16.msra.mxu0 %v1197
          %1233 = vmatprep.subr.bf16.mxu0 0
          %1234 = vmatpush1.bf16.msra.mxu0 %v1198
          %1235 = vmatprep.subr.bf16.mxu0 0
          %1236 = vmatpush1.bf16.msra.mxu0 %v1199
          %1237 = vmatprep.subr.bf16.mxu0 0
          %1238 = vmatpush1.bf16.msra.mxu0 %v1200
          %1239 = vmatprep.subr.bf16.mxu0 0
          %1240 = vmatpush1.bf16.msra.mxu0 %v1201
          %1241 = vmatprep.subr.bf16.mxu0 0
          %1242 = vmatpush1.bf16.msra.mxu0 %v1202
          %1243 = vmatprep.subr.bf16.mxu0 0
          %1244 = vmatpush1.bf16.msra.mxu0 %v1203
          %1245 = vmatprep.subr.bf16.mxu0 0
          %1246 = vmatpush1.bf16.msra.mxu0 %v1204
          %1247 = vmatprep.subr.bf16.mxu0 0
          %1248 = vmatpush1.bf16.msra.mxu0 %v1205
          %1249 = vmatprep.subr.bf16.mxu0 0
          %1250 = vmatpush1.bf16.msra.mxu0 %v1206
          %1251 = vmatprep.subr.bf16.mxu0 0
          %1252 = vmatpush1.bf16.msra.mxu0 %v1207
          %1253 = vmatprep.subr.bf16.mxu0 0
          %1254 = vmatpush1.bf16.msra.mxu0 %v1208
          %1255 = vmatprep.subr.bf16.mxu0 0
          %1256 = vmatpush1.bf16.msra.mxu0 %v1209
          %1257 = vmatprep.subr.bf16.mxu0 0
          %1258 = vmatpush1.bf16.msra.mxu0 %v1210
          %1259 = vmatprep.mubr.bf16.mxu0 %v1084
          %1260 = vmatmul.mubr.bf16.gmra.mrb[0].mxu0 %v1083
          %v1261 = vpop.f32.mrb[0].mxu0
          %v1262 = vadd.f32 0.0, %v1261
          %v1263 = vpop.f32.mrb[0].mxu0
          %v1264 = vpop.f32.mrb[0].mxu0
          %v1265 = vadd.f32 0.0, %v1264
          %v1266 = vpop.f32.mrb[0].mxu0
          %1267 = vmatprep.mubr.bf16.mxu0 %v1086
          %1268 = vmatmul.mubr.bf16.gmra.mrb[0].mxu0 %v1085
          %v1269 = vpop.f32.mrb[0].mxu0
          %v1270 = vadd.f32 0.0, %v1269
          %v1271 = vpop.f32.mrb[0].mxu0
          %v1272 = vpop.f32.mrb[0].mxu0
          %v1273 = vadd.f32 0.0, %v1272
          %v1274 = vpop.f32.mrb[0].mxu0
          %1275 = vmatprep.mubr.bf16.mxu0 %v1088
          %1276 = vmatmul.mubr.bf16.gmra.mrb[0].mxu0 %v1087
          %v1277 = vpop.f32.mrb[0].mxu0
          %v1278 = vadd.f32 0.0, %v1277
          %v1279 = vpop.f32.mrb[0].mxu0
          %v1280 = vpop.f32.mrb[0].mxu0
          %v1281 = vadd.f32 0.0, %v1280
          %v1282 = vpop.f32.mrb[0].mxu0
          %1283 = vmatprep.mubr.bf16.mxu0 %v1090
          %1284 = vmatmul.mubr.bf16.gmra.mrb[0].mxu0 %v1089
          %v1285 = vpop.f32.mrb[0].mxu0
          %v1286 = vadd.f32 0.0, %v1285
          %v1287 = vpop.f32.mrb[0].mxu0
          %v1288 = vpop.f32.mrb[0].mxu0
          %v1289 = vadd.f32 0.0, %v1288
          %v1290 = vpop.f32.mrb[0].mxu0
          %1291 = vmatprep.mubr.bf16.mxu0 %v1092
          %1292 = vmatmul.mubr.bf16.gmra.mrb[0].mxu0 %v1091
          %v1293 = vpop.f32.mrb[0].mxu0
          %v1294 = vadd.f32 0.0, %v1293
          %v1295 = vpop.f32.mrb[0].mxu0
          %v1296 = vpop.f32.mrb[0].mxu0
          %v1297 = vadd.f32 0.0, %v1296
          %v1298 = vpop.f32.mrb[0].mxu0
          %1299 = vmatprep.mubr.bf16.mxu0 %v1094
          %1300 = vmatmul.mubr.bf16.gmra.mrb[0].mxu0 %v1093
          %v1301 = vpop.f32.mrb[0].mxu0
          %v1302 = vadd.f32 0.0, %v1301
          %v1303 = vpop.f32.mrb[0].mxu0
          %v1304 = vpop.f32.mrb[0].mxu0
          %v1305 = vadd.f32 0.0, %v1304
          %v1306 = vpop.f32.mrb[0].mxu0
          %1307 = vmatprep.mubr.bf16.mxu0 %v1096
          %1308 = vmatmul.mubr.bf16.gmra.mrb[0].mxu0 %v1095
          %v1309 = vpop.f32.mrb[0].mxu0
          %v1310 = vadd.f32 0.0, %v1309
          %v1311 = vpop.f32.mrb[0].mxu0
          %v1312 = vpop.f32.mrb[0].mxu0
          %v1313 = vadd.f32 0.0, %v1312
          %v1314 = vpop.f32.mrb[0].mxu0
          %1315 = vmatprep.mubr.bf16.mxu0 %v1098
          %1316 = vmatmul.mubr.bf16.gmra.mrb[0].mxu0 %v1097
          %v1317 = vpop.f32.mrb[0].mxu0
          %v1318 = vadd.f32 0.0, %v1317
          %v1319 = vpop.f32.mrb[0].mxu0
          %v1320 = vpop.f32.mrb[0].mxu0
          %v1321 = vadd.f32 0.0, %v1320
          %v1322 = vpop.f32.mrb[0].mxu0
          %1323 = vdwg.mxu0
          %v1324 = vadd.f32 %v1067, %v1262
          %v1325 = vadd.f32 %v1068, %v1265
          %v1326 = vadd.f32 %v1069, %v1270
          %v1327 = vadd.f32 %v1070, %v1273
          %v1328 = vadd.f32 %v1071, %v1278
          %v1329 = vadd.f32 %v1072, %v1281
          %v1330 = vadd.f32 %v1073, %v1286
          %v1331 = vadd.f32 %v1074, %v1289
          %v1332 = vadd.f32 %v1075, %v1294
          %v1333 = vadd.f32 %v1076, %v1297
          %v1334 = vadd.f32 %v1077, %v1302
          %v1335 = vadd.f32 %v1078, %v1305
          %v1336 = vadd.f32 %v1079, %v1310
          %v1337 = vadd.f32 %v1080, %v1313
          %v1338 = vadd.f32 %v1081, %v1318
          %v1339 = vadd.f32 %v1082, %v1321
          %1340 = vst [vmem:[#allocation2] sm:$0xff] %v1324
          %1341 = vst [vmem:[#allocation2 + $0x8] sm:$0xff] %v1325
          %1342 = vst [vmem:[#allocation2 + $0x10] sm:$0xff] %v1326
          %1343 = vst [vmem:[#allocation2 + $0x18] sm:$0xff] %v1327
          %1344 = vst [vmem:[#allocation2 + $0x20] sm:$0xff] %v1328
          %1345 = vst [vmem:[#allocation2 + $0x28] sm:$0xff] %v1329
          %1346 = vst [vmem:[#allocation2 + $0x30] sm:$0xff] %v1330
          %1347 = vst [vmem:[#allocation2 + $0x38] sm:$0xff] %v1331
          %1348 = vst [vmem:[#allocation2 + $0x40] sm:$0xff] %v1332
          %1349 = vst [vmem:[#allocation2 + $0x48] sm:$0xff] %v1333
          %1350 = vst [vmem:[#allocation2 + $0x50] sm:$0xff] %v1334
          %1351 = vst [vmem:[#allocation2 + $0x58] sm:$0xff] %v1335
          %1352 = vst [vmem:[#allocation2 + $0x60] sm:$0xff] %v1336
          %1353 = vst [vmem:[#allocation2 + $0x68] sm:$0xff] %v1337
          %1354 = vst [vmem:[#allocation2 + $0x70] sm:$0xff] %v1338
          %1355 = vst [vmem:[#allocation2 + $0x78] sm:$0xff] %v1339
        $region64: #{tpu_custom_call.1} parent=35 // pred_fallthru
          _
        %p1356 = scmp.ge.s32.totalorder %s32, 2
        // Predicated region
        $region65: #{tpu_custom_call.1} parent=35 // pred_check
          %p1357 = pneg %p1356
        $region66: #{tpu_custom_call.1} parent=35 // pred_check_branch
          %1359 = sbr.rel (%p1357) target = $region68
        $region67: #{tpu_custom_call.1} parent=35 // pred_region
          %s1360 = ssub.s32 %s32, 2
          %s1361 = smul.u32 %s1360, 128
          %s1362 = scalar_lea.vmem [#allocation11], %s1361
          %v1363 = vld [vmem:[%s1362] sm:$0xff]
          %v1364 = vld [vmem:[%s1362 + $0x8] sm:$0xff]
          %v1365 = vld [vmem:[%s1362 + $0x10] sm:$0xff]
          %v1366 = vld [vmem:[%s1362 + $0x18] sm:$0xff]
          %v1367 = vld [vmem:[%s1362 + $0x20] sm:$0xff]
          %v1368 = vld [vmem:[%s1362 + $0x28] sm:$0xff]
          %v1369 = vld [vmem:[%s1362 + $0x30] sm:$0xff]
          %v1370 = vld [vmem:[%s1362 + $0x38] sm:$0xff]
          %v1371 = vld [vmem:[%s1362 + $0x40] sm:$0xff]
          %v1372 = vld [vmem:[%s1362 + $0x48] sm:$0xff]
          %v1373 = vld [vmem:[%s1362 + $0x50] sm:$0xff]
          %v1374 = vld [vmem:[%s1362 + $0x58] sm:$0xff]
          %v1375 = vld [vmem:[%s1362 + $0x60] sm:$0xff]
          %v1376 = vld [vmem:[%s1362 + $0x68] sm:$0xff]
          %v1377 = vld [vmem:[%s1362 + $0x70] sm:$0xff]
          %v1378 = vld [vmem:[%s1362 + $0x78] sm:$0xff]
          %v1379 = vld [vmem:[%s385] sm:$0xf]
          %v1380 = vld [vmem:[%s385 + $0x4] sm:$0xf]
          %v1381 = vld [vmem:[%s385 + $0x8] sm:$0xf]
          %v1382 = vld [vmem:[%s385 + $0xc] sm:$0xf]
          %v1383 = vld [vmem:[%s385 + $0x10] sm:$0xf]
          %v1384 = vld [vmem:[%s385 + $0x14] sm:$0xf]
          %v1385 = vld [vmem:[%s385 + $0x18] sm:$0xf]
          %v1386 = vld [vmem:[%s385 + $0x1c] sm:$0xf]
          %v1387 = vld [vmem:[%s385 + $0x20] sm:$0xf]
          %v1388 = vld [vmem:[%s385 + $0x24] sm:$0xf]
          %v1389 = vld [vmem:[%s385 + $0x28] sm:$0xf]
          %v1390 = vld [vmem:[%s385 + $0x2c] sm:$0xf]
          %v1391 = vld [vmem:[%s385 + $0x30] sm:$0xf]
          %v1392 = vld [vmem:[%s385 + $0x34] sm:$0xf]
          %v1393 = vld [vmem:[%s385 + $0x38] sm:$0xf]
          %v1394 = vld [vmem:[%s385 + $0x3c] sm:$0xf]
          %v1395 = vld [vmem:[#allocation2] sm:$0xff]
          %v1396 = vld [vmem:[#allocation2 + $0x8] sm:$0xff]
          %v1397 = vld [vmem:[#allocation2 + $0x10] sm:$0xff]
          %v1398 = vld [vmem:[#allocation2 + $0x18] sm:$0xff]
          %v1399 = vld [vmem:[#allocation2 + $0x20] sm:$0xff]
          %v1400 = vld [vmem:[#allocation2 + $0x28] sm:$0xff]
          %v1401 = vld [vmem:[#allocation2 + $0x30] sm:$0xff]
          %v1402 = vld [vmem:[#allocation2 + $0x38] sm:$0xff]
          %v1403 = vld [vmem:[#allocation2 + $0x40] sm:$0xff]
          %v1404 = vld [vmem:[#allocation2 + $0x48] sm:$0xff]
          %v1405 = vld [vmem:[#allocation2 + $0x50] sm:$0xff]
          %v1406 = vld [vmem:[#allocation2 + $0x58] sm:$0xff]
          %v1407 = vld [vmem:[#allocation2 + $0x60] sm:$0xff]
          %v1408 = vld [vmem:[#allocation2 + $0x68] sm:$0xff]
          %v1409 = vld [vmem:[#allocation2 + $0x70] sm:$0xff]
          %v1410 = vld [vmem:[#allocation2 + $0x78] sm:$0xff]
          %v1411 = vpack.c.bf16 %v1396, %v1395
          %v1412 = vpack.c.bf16 %v1398, %v1397
          %v1413 = vpack.c.bf16 %v1400, %v1399
          %v1414 = vpack.c.bf16 %v1402, %v1401
          %v1415 = vpack.c.bf16 %v1404, %v1403
          %v1416 = vpack.c.bf16 %v1406, %v1405
          %v1417 = vpack.c.bf16 %v1408, %v1407
          %v1418 = vpack.c.bf16 %v1410, %v1409
          %v1435 = vunpack.c.l.b16 %v1379
          %v1436 = vunpack.c.l.b16 %v1380
          %v1437 = vunpack.c.l.b16 %v1381
          %v1438 = vunpack.c.l.b16 %v1382
          %v1439 = vunpack.c.l.b16 %v1383
          %v1440 = vunpack.c.l.b16 %v1384
          %v1441 = vunpack.c.l.b16 %v1385
          %v1442 = vunpack.c.l.b16 %v1386
          %v1443 = vunpack.c.l.b16 %v1387
          %v1444 = vunpack.c.l.b16 %v1388
          %v1445 = vunpack.c.l.b16 %v1389
          %v1446 = vunpack.c.l.b16 %v1390
          %v1447 = vunpack.c.l.b16 %v1391
          %v1448 = vunpack.c.l.b16 %v1392
          %v1449 = vunpack.c.l.b16 %v1393
          %v1450 = vunpack.c.l.b16 %v1394
          %v1451 = vpack.c.b16 %v1436, %v1435
          %v1452 = vpack.c.b16 %v1438, %v1437
          %v1453 = vpack.c.b16 %v1440, %v1439
          %v1454 = vpack.c.b16 %v1442, %v1441
          %v1455 = vpack.c.b16 %v1444, %v1443
          %v1456 = vpack.c.b16 %v1446, %v1445
          %v1457 = vpack.c.b16 %v1448, %v1447
          %v1458 = vpack.c.b16 %v1450, %v1449
          %1467 = vmatprep.subr.bf16.mxu0 0
          %1468 = vmatpush1.bf16.msra.mxu0 %v1411
          %1469 = vmatprep.subr.bf16.mxu0 0
          %1470 = vmatpush1.bf16.msra.mxu0 %v1412
          %1471 = vmatprep.subr.bf16.mxu0 0
          %1472 = vmatpush1.bf16.msra.mxu0 %v1413
          %1473 = vmatprep.subr.bf16.mxu0 0
          %1474 = vmatpush1.bf16.msra.mxu0 %v1414
          %1475 = vmatprep.subr.bf16.mxu0 0
          %1476 = vmatpush1.bf16.msra.mxu0 %v1415
          %1477 = vmatprep.subr.bf16.mxu0 0
          %1478 = vmatpush1.bf16.msra.mxu0 %v1416
          %1479 = vmatprep.subr.bf16.mxu0 0
          %1480 = vmatpush1.bf16.msra.mxu0 %v1417
          %1481 = vmatprep.subr.bf16.mxu0 0
          %1482 = vmatpush1.bf16.msra.mxu0 %v1418
          %1483 = vmatprep.subr.bf16.mxu0 0
          %1484 = vmatpush1.bf16.msra.mxu0 0
          %1485 = vmatprep.subr.bf16.mxu0 0
          %1486 = vmatpush1.bf16.msra.mxu0 0
          %1487 = vmatprep.subr.bf16.mxu0 0
          %1488 = vmatpush1.bf16.msra.mxu0 0
          %1489 = vmatprep.subr.bf16.mxu0 0
          %1490 = vmatpush1.bf16.msra.mxu0 0
          %1491 = vmatprep.subr.bf16.mxu0 0
          %1492 = vmatpush1.bf16.msra.mxu0 0
          %1493 = vmatprep.subr.bf16.mxu0 0
          %1494 = vmatpush1.bf16.msra.mxu0 0
          %1495 = vmatprep.subr.bf16.mxu0 0
          %1496 = vmatpush1.bf16.msra.mxu0 0
          %1497 = vmatprep.subr.bf16.mxu0 0
          %1498 = vmatpush1.bf16.msra.mxu0 0
          %1499 = vmatprep.mubr.bf16.mxu0 0
          %1500 = vmatmul.mubr.bf16.gmra.mrb[0].mxu0 %v1451
          %v1501 = vpop.f32.mrb[0].mxu0
          %v1502 = vadd.f32 0.0, %v1501
          %v1503 = vpop.f32.mrb[0].mxu0
          %v1504 = vpop.f32.mrb[0].mxu0
          %v1505 = vadd.f32 0.0, %v1504
          %v1506 = vpop.f32.mrb[0].mxu0
          %1507 = vmatprep.mubr.bf16.mxu0 0
          %1508 = vmatmul.mubr.bf16.gmra.mrb[0].mxu0 %v1452
          %v1509 = vpop.f32.mrb[0].mxu0
          %v1510 = vadd.f32 0.0, %v1509
          %v1511 = vpop.f32.mrb[0].mxu0
          %v1512 = vpop.f32.mrb[0].mxu0
          %v1513 = vadd.f32 0.0, %v1512
          %v1514 = vpop.f32.mrb[0].mxu0
          %1515 = vmatprep.mubr.bf16.mxu0 0
          %1516 = vmatmul.mubr.bf16.gmra.mrb[0].mxu0 %v1453
          %v1517 = vpop.f32.mrb[0].mxu0
          %v1518 = vadd.f32 0.0, %v1517
          %v1519 = vpop.f32.mrb[0].mxu0
          %v1520 = vpop.f32.mrb[0].mxu0
          %v1521 = vadd.f32 0.0, %v1520
          %v1522 = vpop.f32.mrb[0].mxu0
          %1523 = vmatprep.mubr.bf16.mxu0 0
          %1524 = vmatmul.mubr.bf16.gmra.mrb[0].mxu0 %v1454
          %v1525 = vpop.f32.mrb[0].mxu0
          %v1526 = vadd.f32 0.0, %v1525
          %v1527 = vpop.f32.mrb[0].mxu0
          %v1528 = vpop.f32.mrb[0].mxu0
          %v1529 = vadd.f32 0.0, %v1528
          %v1530 = vpop.f32.mrb[0].mxu0
          %1531 = vmatprep.mubr.bf16.mxu0 0
          %1532 = vmatmul.mubr.bf16.gmra.mrb[0].mxu0 %v1455
          %v1533 = vpop.f32.mrb[0].mxu0
          %v1534 = vadd.f32 0.0, %v1533
          %v1535 = vpop.f32.mrb[0].mxu0
          %v1536 = vpop.f32.mrb[0].mxu0
          %v1537 = vadd.f32 0.0, %v1536
          %v1538 = vpop.f32.mrb[0].mxu0
          %1539 = vmatprep.mubr.bf16.mxu0 0
          %1540 = vmatmul.mubr.bf16.gmra.mrb[0].mxu0 %v1456
          %v1541 = vpop.f32.mrb[0].mxu0
          %v1542 = vadd.f32 0.0, %v1541
          %v1543 = vpop.f32.mrb[0].mxu0
          %v1544 = vpop.f32.mrb[0].mxu0
          %v1545 = vadd.f32 0.0, %v1544
          %v1546 = vpop.f32.mrb[0].mxu0
          %1547 = vmatprep.mubr.bf16.mxu0 0
          %1548 = vmatmul.mubr.bf16.gmra.mrb[0].mxu0 %v1457
          %v1549 = vpop.f32.mrb[0].mxu0
          %v1550 = vadd.f32 0.0, %v1549
          %v1551 = vpop.f32.mrb[0].mxu0
          %v1552 = vpop.f32.mrb[0].mxu0
          %v1553 = vadd.f32 0.0, %v1552
          %v1554 = vpop.f32.mrb[0].mxu0
          %1555 = vmatprep.mubr.bf16.mxu0 0
          %1556 = vmatmul.mubr.bf16.gmra.mrb[0].mxu0 %v1458
          %v1557 = vpop.f32.mrb[0].mxu0
          %v1558 = vadd.f32 0.0, %v1557
          %v1559 = vpop.f32.mrb[0].mxu0
          %v1560 = vpop.f32.mrb[0].mxu0
          %v1561 = vadd.f32 0.0, %v1560
          %v1562 = vpop.f32.mrb[0].mxu0
          %1563 = vdwg.mxu0
          %v1564 = vadd.f32 %v1363, %v1502
          %v1565 = vadd.f32 %v1364, %v1505
          %v1566 = vadd.f32 %v1365, %v1510
          %v1567 = vadd.f32 %v1366, %v1513
          %v1568 = vadd.f32 %v1367, %v1518
          %v1569 = vadd.f32 %v1368, %v1521
          %v1570 = vadd.f32 %v1369, %v1526
          %v1571 = vadd.f32 %v1370, %v1529
          %v1572 = vadd.f32 %v1371, %v1534
          %v1573 = vadd.f32 %v1372, %v1537
          %v1574 = vadd.f32 %v1373, %v1542
          %v1575 = vadd.f32 %v1374, %v1545
          %v1576 = vadd.f32 %v1375, %v1550
          %v1577 = vadd.f32 %v1376, %v1553
          %v1578 = vadd.f32 %v1377, %v1558
          %v1579 = vadd.f32 %v1378, %v1561
          %1580 = vst [vmem:[%s1362] sm:$0xff] %v1564
          %1581 = vst [vmem:[%s1362 + $0x8] sm:$0xff] %v1565
          %1582 = vst [vmem:[%s1362 + $0x10] sm:$0xff] %v1566
          %1583 = vst [vmem:[%s1362 + $0x18] sm:$0xff] %v1567
          %1584 = vst [vmem:[%s1362 + $0x20] sm:$0xff] %v1568
          %1585 = vst [vmem:[%s1362 + $0x28] sm:$0xff] %v1569
          %1586 = vst [vmem:[%s1362 + $0x30] sm:$0xff] %v1570
          %1587 = vst [vmem:[%s1362 + $0x38] sm:$0xff] %v1571
          %1588 = vst [vmem:[%s1362 + $0x40] sm:$0xff] %v1572
          %1589 = vst [vmem:[%s1362 + $0x48] sm:$0xff] %v1573
          %1590 = vst [vmem:[%s1362 + $0x50] sm:$0xff] %v1574
          %1591 = vst [vmem:[%s1362 + $0x58] sm:$0xff] %v1575
          %1592 = vst [vmem:[%s1362 + $0x60] sm:$0xff] %v1576
          %1593 = vst [vmem:[%s1362 + $0x68] sm:$0xff] %v1577
          %1594 = vst [vmem:[%s1362 + $0x70] sm:$0xff] %v1578
          %1595 = vst [vmem:[%s1362 + $0x78] sm:$0xff] %v1579
        $region68: #{tpu_custom_call.1} parent=35 // pred_fallthru
          _
        // Predicated region
        $region69: #{tpu_custom_call.1} parent=35 // pred_check
          %p1596 = pneg %p214
        $region70: #{tpu_custom_call.1} parent=35 // pred_check_branch
          %1598 = sbr.rel (%p1596) target = $region72
        $region71: #{tpu_custom_call.1} parent=35 // pred_region
          %s1600 = ssub.s32 4096, 4096
          %1601 = vsyncadd [#allocation5], %s1600
          %s1602 = smul.addr %s30, 32
          %s1603 = smul.addr %s1602, 128
          %s1604 = scalar_lea.hbm %s4, %s1603
          %s1605 = sshll.u32 [#allocation11], 4
          %s1606 = int_to_ptr.vmem [resolvable:$true] %s1605
          %1611 = dma.vmem_to_hbm [thread:$0]  %s1606, 4096, %s1604, [#allocation5], 128, 128, 8
        $region72: #{tpu_custom_call.1} parent=35 // pred_fallthru
          _
        // Predicated region
        $region73: #{tpu_custom_call.1} parent=35 // pred_check
          %p1612 = pneg %p214
        $region74: #{tpu_custom_call.1} parent=35 // pred_check_branch
          %1614 = sbr.rel (%p1612) target = $region76
        $region75: #{tpu_custom_call.1} parent=35 // pred_region
          %1615 = dma.done [#allocation5], 4096
        $region76: #{tpu_custom_call.1} parent=35 // pred_fallthru
          _
      $region36: #{tpu_custom_call.1} parent=5 // pred_fallthru
        _
      %p1616 = scmp.le.s32.totalorder 2, %s20
      // Predicated region
      $region77: #{tpu_custom_call.1} parent=5 // pred_check
        %p1617 = pneg %p1616
      $region78: #{tpu_custom_call.1} parent=5 // pred_check_branch
        %1619 = sbr.rel (%p1617) target = $region80
      $region79: #{tpu_custom_call.1} parent=5 // pred_region
        %s1620 = ssub.s32 %s20, 2
      $region80: #{tpu_custom_call.1} parent=5 // pred_fallthru
        _
    $region6: #{tpu_custom_call.1} parent=1 // loop_footer
      %s24 = sadd.s32 1, %s20
    $region7: #{tpu_custom_call.1} parent=1 // loop_footer_branch
      %19 = sbr.rel target = $region3
    $region8: #{tpu_custom_call.1} parent=1 // loop_exit
      _
    %1621 = vsyncpa [#allocation4], 1
    %s1622 = scalar_lea.sflag [#allocation4], 1
    %1623 = vsyncpa %s1622, 1
    %1624 = vsyncpa [#allocation7], 1
    %s1625 = scalar_lea.sflag [#allocation7], 1
    %1626 = vsyncpa %s1625, 1
    %1627 = vsyncpa [#allocation10], 1
    %s1628 = scalar_lea.sflag [#allocation10], 1
    %1629 = vsyncpa %s1628, 1
    %1630 = vsyncpa [#allocation5], 1
    %s1631 = scalar_lea.sflag [#allocation5], 1
    %1632 = vsyncpa %s1631, 1

</llo_original>
